<compile_context>
chip_gen: v5e
topology: v5e:2x2
jax: 0.10.0
libtpu: 0.0.40
codegen_flags: <defaults>
</compile_context>

<pallas_src>
import functools

import jax
import jax.numpy as jnp
from jax.experimental import pallas as pl
from jax.experimental.pallas import tpu as pltpu


# ----------------------------------------------------------------------------
# Fused kernel: temporal conv + bias + ReLU + residual + LayerNorm
# ----------------------------------------------------------------------------
def _tds_block_kernel(x_cur_ref, x_halo_ref, w_ref, b_ref, g_ref, beta_ref,
                      o_ref, win_ref, *, n_batch, kernel_width, eps):
    tm, F = x_cur_ref.shape
    halo = (kernel_width - 1) * n_batch      # conv halo rows actually used
    halo_fetch = x_halo_ref.shape[0]         # halo rounded up to 8 sublanes

    # Stage the (tm + halo_fetch)-row input window once, cast to bf16 for MXU.
    win_ref[:tm, :] = x_cur_ref[...].astype(win_ref.dtype)
    win_ref[tm:, :] = x_halo_ref[...].astype(win_ref.dtype)

    # Temporal conv: K lane-dense (tm, F) @ (F, F) bf16 matmuls, f32 accumulate.
    # Tap k is a static shift of k * n_batch rows in the flattened (T*N, F) view.
    acc = jnp.dot(win_ref[:tm, :], w_ref[0], preferred_element_type=jnp.float32)
    for k in range(1, kernel_width):
        xk = win_ref[k * n_batch: k * n_batch + tm, :]
        acc = acc + jnp.dot(xk, w_ref[k], preferred_element_type=jnp.float32)

    # Residual inputs[-T_out:] in full input precision (from the f32 refs,
    # NOT from the bf16 staging scratch).
    if halo < tm:
        res = jnp.concatenate([x_cur_ref[halo:, :], x_halo_ref[:halo, :]], axis=0)
    else:
        res = x_halo_ref[:halo, :]
    res = res.astype(jnp.float32)

    # bias + ReLU + residual (f32), then LayerNorm over the feature dim.
    y = jnp.maximum(acc + b_ref[...].astype(jnp.float32), 0.0) + res
    mean = jnp.mean(y, axis=-1, keepdims=True)
    yc = y - mean
    var = jnp.mean(yc * yc, axis=-1, keepdims=True)
    yn = yc * jax.lax.rsqrt(var + eps)
    o_ref[...] = (yn * g_ref[...].astype(jnp.float32)
                  + beta_ref[...].astype(jnp.float32)).astype(o_ref.dtype)


# ----------------------------------------------------------------------------
# Wrapper
# ----------------------------------------------------------------------------
def tds_conv2d_block(x, conv_w, conv_b, ln_gamma, ln_beta, *,
                     channels, width, kernel_width, block_rows=1024, eps=1e-5):
    """Fused TDSConv2dBlock forward.

    x:        (T_in, N, channels*width)
    conv_w:   (C_out=channels, C_in=channels, kernel_width)  (Conv2d weight, H-kernel=1 squeezed)
    conv_b:   (channels,)
    ln_gamma, ln_beta: (channels*width,)
    returns:  (T_out, N, channels*width) with T_out = T_in - kernel_width + 1
    """
    T_in, N, F = x.shape
    assert F == channels * width, "invariant channels * width == num_features"
    K = kernel_width
    assert K >= 2, "kernel_width >= 2 (K == 1 degenerates to a pointwise conv)"
    assert T_in >= K
    T_out = T_in - K + 1

    halo = (K - 1) * N                      # conv halo rows
    halo_fetch = -(-halo // 8) * 8          # rounded up to 8 sublanes for the DMA block
    R_in, R_out = T_in * N, T_out * N

    # Row tile: a multiple of halo_fetch (hence of 8), as large as requested,
    # but keep >= 2 grid steps when possible so both v7x TensorCores get work.
    L = halo_fetch
    tm = max(L, (block_rows // L) * L)
    while tm > L and pl.cdiv(R_out, tm) < 2:
        tm = max(L, ((tm // 2) // L) * L)

    grid_m = pl.cdiv(R_out, tm)
    R_out_pad = grid_m * tm
    R_in_pad = R_out_pad + halo_fetch       # halo block of the last tile stays in-bounds

    x2d = jnp.pad(x.reshape(R_in, F), ((0, R_in_pad - R_in), (0, 0)))

    # Width-diagonal (Kronecker) expansion of the conv weight, bf16 for the MXU:
    #   w_exp[k, ci*W + wi, co*W + wo] = conv_w[co, ci, k] * (wi == wo)
    eye_w = jnp.eye(width, dtype=jnp.float32)
    w_exp = jnp.einsum("oik,vw->kivow", conv_w.astype(jnp.float32), eye_w)
    w_exp = w_exp.reshape(K, F, F).astype(jnp.bfloat16)
    b_feat = jnp.repeat(conv_b, width).reshape(1, F).astype(jnp.float32)

    steps_per_tile = tm // halo_fetch       # tm is a multiple of halo_fetch

    kernel = functools.partial(_tds_block_kernel, n_batch=N,
                               kernel_width=K, eps=eps)
    out2d = pl.pallas_call(
        kernel,
        grid=(grid_m,),
        in_specs=[
            pl.BlockSpec((tm, F), lambda i: (i, 0)),                # rows [i*tm, (i+1)*tm)
            pl.BlockSpec((halo_fetch, F),
                         lambda i: ((i + 1) * steps_per_tile, 0)),  # halo rows [(i+1)*tm, +halo_fetch)
            pl.BlockSpec((K, F, F), lambda i: (0, 0, 0)),           # expanded conv weight (bf16)
            pl.BlockSpec((1, F), lambda i: (0, 0)),                 # conv bias (per feature, f32)
            pl.BlockSpec((1, F), lambda i: (0, 0)),                 # LayerNorm gamma
            pl.BlockSpec((1, F), lambda i: (0, 0)),                 # LayerNorm beta
        ],
        out_specs=pl.BlockSpec((tm, F), lambda i: (i, 0)),
        out_shape=jax.ShapeDtypeStruct((R_out_pad, F), x.dtype),
        scratch_shapes=[pltpu.VMEM((tm + halo_fetch, F), jnp.bfloat16)],
        compiler_params=pltpu.CompilerParams(
            dimension_semantics=("parallel",),
            vmem_limit_bytes=32 * 1024 * 1024,   # explicit; safe on v5e/v6e/v7x
        ),
    )(x2d, x2d, w_exp, b_feat,
      ln_gamma.reshape(1, F).astype(jnp.float32),
      ln_beta.reshape(1, F).astype(jnp.float32))

    return out2d[:R_out].reshape(T_out, N, F)


# ----------------------------------------------------------------------------
# Pure-JAX reference (mirrors the PyTorch module exactly) for a numeric check
# ----------------------------------------------------------------------------
def tds_conv2d_block_ref(x, conv_w, conv_b, ln_gamma, ln_beta, *,
                         channels, width, kernel_width, eps=1e-5):
    T_in, N, F = x.shape
    K = kernel_width
    T_out = T_in - K + 1
    xr = jnp.moveaxis(x, 0, -1).reshape(N, channels, width, T_in)
    taps = jnp.stack([xr[..., k:k + T_out] for k in range(K)], axis=-1)  # (N,C,W,T_out,K)
    y = jnp.einsum("ncwtk,ock->nowt", taps, conv_w,
                   precision=jax.lax.Precision.HIGHEST) + conv_b[None, :, None, None]
    y = jnp.maximum(y, 0.0)
    y = jnp.moveaxis(y.reshape(N, F, T_out), -1, 0)                      # (T_out,N,F)
    y = y + x[-T_out:]
    mean = y.mean(-1, keepdims=True)
    var = ((y - mean) ** 2).mean(-1, keepdims=True)
    return (y - mean) * jax.lax.rsqrt(var + eps) * ln_gamma + ln_beta


# ----------------------------------------------------------------------------
if __name__ == "__main__":
    # Small shapes consistent with the module: channels * width = num_features.
    CHANNELS, WIDTH, KERNEL_WIDTH = 16, 8, 5
    NUM_FEATURES = CHANNELS * WIDTH          # 128 -> lane-dense feature dim
    T_IN, N = 36, 8                          # T_out = 32 -> 256 output rows -> 2 row tiles

    key = jax.random.PRNGKey(0)
    kx, kw, kb = jax.random.split(key, 3)
    x = jax.random.normal(kx, (T_IN, N, NUM_FEATURES), jnp.float32)

    # Conv2d(C, C, kernel_size=(1, K)) parameters (PyTorch-style uniform init).
    fan_in = CHANNELS * KERNEL_WIDTH
    bound = 1.0 / (fan_in ** 0.5)
    conv_w = jax.random.uniform(kw, (CHANNELS, CHANNELS, KERNEL_WIDTH),
                                jnp.float32, -bound, bound)
    conv_b = jax.random.uniform(kb, (CHANNELS,), jnp.float32, -bound, bound)
    ln_gamma = jnp.ones((NUM_FEATURES,), jnp.float32)
    ln_beta = jnp.zeros((NUM_FEATURES,), jnp.float32)

    fwd = jax.jit(functools.partial(tds_conv2d_block, channels=CHANNELS,
                                    width=WIDTH, kernel_width=KERNEL_WIDTH))
    out = fwd(x, conv_w, conv_b, ln_gamma, ln_beta)
    jax.block_until_ready(out)

    ref = tds_conv2d_block_ref(x, conv_w, conv_b, ln_gamma, ln_beta,
                               channels=CHANNELS, width=WIDTH,
                               kernel_width=KERNEL_WIDTH)
    assert out.shape == (T_IN - KERNEL_WIDTH + 1, N, NUM_FEATURES)
    assert bool(jnp.all(jnp.isfinite(out)))
    # Tolerance accounts for bf16 MXU operands (f32 accumulation) vs the f32
    # HIGHEST-precision reference einsum.
    max_err = float(jnp.max(jnp.abs(out - ref)))
    assert bool(jnp.allclose(out, ref, atol=2e-2, rtol=2e-2)), max_err
    print("KERNEL_OK")
</pallas_src>

<mosaic_0001>
module attributes {stable_mosaic.version = 11 : i64} {
  func.func @_tds_block_kernel(%arg0: i32, %arg1: memref<128x128xf32, #tpu.memory_space<vmem>>, %arg2: memref<32x128xf32, #tpu.memory_space<vmem>>, %arg3: memref<5x128x128xbf16, #tpu.memory_space<vmem>>, %arg4: memref<1x128xf32, #tpu.memory_space<vmem>>, %arg5: memref<1x128xf32, #tpu.memory_space<vmem>>, %arg6: memref<1x128xf32, #tpu.memory_space<vmem>>, %arg7: memref<128x128xf32, #tpu.memory_space<vmem>>, %arg8: memref<160x128xbf16, #tpu.memory_space<vmem>>) attributes {dimension_semantics = [#tpu.dimension_semantics<parallel>], iteration_bounds = array<i64: 2>, scalar_prefetch = 0 : i64, scratch_operands = 1 : i64, tpu.core_type = #tpu.core_type<tc>, window_params = [{transform_indices = @transform_0, window_bounds = array<i64: 128, 128>}, {transform_indices = @transform_1, window_bounds = array<i64: 32, 128>}, {pipeline_mode = #tpu.pipeline_mode<synchronous>, transform_indices = @transform_2, window_bounds = array<i64: 5, 128, 128>}, {pipeline_mode = #tpu.pipeline_mode<synchronous>, transform_indices = @transform_3, window_bounds = array<i64: 1, 128>}, {pipeline_mode = #tpu.pipeline_mode<synchronous>, transform_indices = @transform_4, window_bounds = array<i64: 1, 128>}, {pipeline_mode = #tpu.pipeline_mode<synchronous>, transform_indices = @transform_5, window_bounds = array<i64: 1, 128>}, {transform_indices = @transform_6, window_bounds = array<i64: 128, 128>}]} {
    %c0 = arith.constant 0 : index
    %c0_0 = arith.constant 0 : index
    %0 = vector.load %arg1[%c0, %c0_0] : memref<128x128xf32, #tpu.memory_space<vmem>>, vector<128x128xf32>
    %1 = arith.truncf %0 : vector<128x128xf32> to vector<128x128xbf16>
    %c0_1 = arith.constant 0 : index
    %c0_2 = arith.constant 0 : index
    %2 = vector.load %arg8[%c0_1, %c0_2] : memref<160x128xbf16, #tpu.memory_space<vmem>>, vector<128x128xbf16>
    tpu.vector_store %arg8[%c0_1, %c0_2], %1 {strides = array<i32>} : memref<160x128xbf16, #tpu.memory_space<vmem>>, vector<128x128xbf16>,
    %c0_3 = arith.constant 0 : index
    %c0_4 = arith.constant 0 : index
    %3 = vector.load %arg2[%c0_3, %c0_4] : memref<32x128xf32, #tpu.memory_space<vmem>>, vector<32x128xf32>
    %4 = arith.truncf %3 : vector<32x128xf32> to vector<32x128xbf16>
    %c128 = arith.constant 128 : index
    %c0_5 = arith.constant 0 : index
    %5 = vector.load %arg8[%c128, %c0_5] : memref<160x128xbf16, #tpu.memory_space<vmem>>, vector<32x128xbf16>
    tpu.vector_store %arg8[%c128, %c0_5], %4 {strides = array<i32>} : memref<160x128xbf16, #tpu.memory_space<vmem>>, vector<32x128xbf16>,
    %c0_6 = arith.constant 0 : index
    %c0_7 = arith.constant 0 : index
    %6 = vector.load %arg8[%c0_6, %c0_7] : memref<160x128xbf16, #tpu.memory_space<vmem>>, vector<128x128xbf16>
    %c0_8 = arith.constant 0 : index
    %c0_9 = arith.constant 0 : index
    %c0_10 = arith.constant 0 : index
    %7 = vector.load %arg3[%c0_8, %c0_9, %c0_10] : memref<5x128x128xbf16, #tpu.memory_space<vmem>>, vector<1x128x128xbf16>
    %8 = vector.shape_cast %7 : vector<1x128x128xbf16> to vector<128x128xbf16>
    %cst = arith.constant dense<0.000000e+00> : vector<128x128xf32>
    %9 = tpu.matmul %6, %8, %cst {dimension_numbers = #tpu.dot_dimension_numbers<[1], [0], [0], [1], [0, 0, 1, 1], [], []>} : vector<128x128xbf16>, vector<128x128xbf16>, vector<128x128xf32> -> vector<128x128xf32>
    %c8 = arith.constant 8 : index
    %c0_11 = arith.constant 0 : index
    %10 = vector.load %arg8[%c8, %c0_11] : memref<160x128xbf16, #tpu.memory_space<vmem>>, vector<128x128xbf16>
    %c1 = arith.constant 1 : index
    %c0_12 = arith.constant 0 : index
    %c0_13 = arith.constant 0 : index
    %11 = vector.load %arg3[%c1, %c0_12, %c0_13] : memref<5x128x128xbf16, #tpu.memory_space<vmem>>, vector<1x128x128xbf16>
    %12 = vector.shape_cast %11 : vector<1x128x128xbf16> to vector<128x128xbf16>
    %cst_14 = arith.constant dense<0.000000e+00> : vector<128x128xf32>
    %13 = tpu.matmul %10, %12, %cst_14 {dimension_numbers = #tpu.dot_dimension_numbers<[1], [0], [0], [1], [0, 0, 1, 1], [], []>} : vector<128x128xbf16>, vector<128x128xbf16>, vector<128x128xf32> -> vector<128x128xf32>
    %14 = arith.addf %9, %13 : vector<128x128xf32>
    %c16 = arith.constant 16 : index
    %c0_15 = arith.constant 0 : index
    %15 = vector.load %arg8[%c16, %c0_15] : memref<160x128xbf16, #tpu.memory_space<vmem>>, vector<128x128xbf16>
    %c2 = arith.constant 2 : index
    %c0_16 = arith.constant 0 : index
    %c0_17 = arith.constant 0 : index
    %16 = vector.load %arg3[%c2, %c0_16, %c0_17] : memref<5x128x128xbf16, #tpu.memory_space<vmem>>, vector<1x128x128xbf16>
    %17 = vector.shape_cast %16 : vector<1x128x128xbf16> to vector<128x128xbf16>
    %cst_18 = arith.constant dense<0.000000e+00> : vector<128x128xf32>
    %18 = tpu.matmul %15, %17, %cst_18 {dimension_numbers = #tpu.dot_dimension_numbers<[1], [0], [0], [1], [0, 0, 1, 1], [], []>} : vector<128x128xbf16>, vector<128x128xbf16>, vector<128x128xf32> -> vector<128x128xf32>
    %19 = arith.addf %14, %18 : vector<128x128xf32>
    %c24 = arith.constant 24 : index
    %c0_19 = arith.constant 0 : index
    %20 = vector.load %arg8[%c24, %c0_19] : memref<160x128xbf16, #tpu.memory_space<vmem>>, vector<128x128xbf16>
    %c3 = arith.constant 3 : index
    %c0_20 = arith.constant 0 : index
    %c0_21 = arith.constant 0 : index
    %21 = vector.load %arg3[%c3, %c0_20, %c0_21] : memref<5x128x128xbf16, #tpu.memory_space<vmem>>, vector<1x128x128xbf16>
    %22 = vector.shape_cast %21 : vector<1x128x128xbf16> to vector<128x128xbf16>
    %cst_22 = arith.constant dense<0.000000e+00> : vector<128x128xf32>
    %23 = tpu.matmul %20, %22, %cst_22 {dimension_numbers = #tpu.dot_dimension_numbers<[1], [0], [0], [1], [0, 0, 1, 1], [], []>} : vector<128x128xbf16>, vector<128x128xbf16>, vector<128x128xf32> -> vector<128x128xf32>
    %24 = arith.addf %19, %23 : vector<128x128xf32>
    %c32 = arith.constant 32 : index
    %c0_23 = arith.constant 0 : index
    %25 = vector.load %arg8[%c32, %c0_23] : memref<160x128xbf16, #tpu.memory_space<vmem>>, vector<128x128xbf16>
    %c4 = arith.constant 4 : index
    %c0_24 = arith.constant 0 : index
    %c0_25 = arith.constant 0 : index
    %26 = vector.load %arg3[%c4, %c0_24, %c0_25] : memref<5x128x128xbf16, #tpu.memory_space<vmem>>, vector<1x128x128xbf16>
    %27 = vector.shape_cast %26 : vector<1x128x128xbf16> to vector<128x128xbf16>
    %cst_26 = arith.constant dense<0.000000e+00> : vector<128x128xf32>
    %28 = tpu.matmul %25, %27, %cst_26 {dimension_numbers = #tpu.dot_dimension_numbers<[1], [0], [0], [1], [0, 0, 1, 1], [], []>} : vector<128x128xbf16>, vector<128x128xbf16>, vector<128x128xf32> -> vector<128x128xf32>
    %29 = arith.addf %24, %28 : vector<128x128xf32>
    %c32_27 = arith.constant 32 : index
    %c0_28 = arith.constant 0 : index
    %30 = vector.load %arg1[%c32_27, %c0_28] : memref<128x128xf32, #tpu.memory_space<vmem>>, vector<96x128xf32>
    %c0_29 = arith.constant 0 : index
    %c0_30 = arith.constant 0 : index
    %31 = vector.load %arg2[%c0_29, %c0_30] : memref<32x128xf32, #tpu.memory_space<vmem>>, vector<32x128xf32>
    %32 = tpu.concatenate %30, %31 in 0 : vector<96x128xf32>, vector<32x128xf32> -> vector<128x128xf32>
    %c0_31 = arith.constant 0 : index
    %c0_32 = arith.constant 0 : index
    %33 = vector.load %arg4[%c0_31, %c0_32] : memref<1x128xf32, #tpu.memory_space<vmem>>, vector<1x128xf32>
    %34 = vector.broadcast %33 : vector<1x128xf32> to vector<128x128xf32>
    %35 = arith.addf %29, %34 : vector<128x128xf32>
    %cst_33 = arith.constant 0.000000e+00 : f32
    %36 = vector.broadcast %cst_33 : f32 to vector<128x128xf32>
    %37 = arith.maximumf %35, %36 : vector<128x128xf32>
    %38 = arith.addf %37, %32 : vector<128x128xf32>
    %cst_34 = arith.constant dense<0.000000e+00> : vector<128xf32>
    %39 = vector.multi_reduction <add>, %38, %cst_34 [1] : vector<128x128xf32> to vector<128xf32>
    %40 = vector.shape_cast %39 : vector<128xf32> to vector<128x1xf32>
    %cst_35 = arith.constant 1.280000e+02 : f32
    %41 = vector.broadcast %cst_35 : f32 to vector<128x1xf32>
    %42 = arith.divf %40, %41 : vector<128x1xf32>
    %43 = vector.broadcast %42 : vector<128x1xf32> to vector<128x128xf32>
    %44 = arith.subf %38, %43 : vector<128x128xf32>
    %45 = arith.mulf %44, %44 : vector<128x128xf32>
    %cst_36 = arith.constant dense<0.000000e+00> : vector<128xf32>
    %46 = vector.multi_reduction <add>, %45, %cst_36 [1] : vector<128x128xf32> to vector<128xf32>
    %47 = vector.shape_cast %46 : vector<128xf32> to vector<128x1xf32>
    %cst_37 = arith.constant 1.280000e+02 : f32
    %48 = vector.broadcast %cst_37 : f32 to vector<128x1xf32>
    %49 = arith.divf %47, %48 : vector<128x1xf32>
    %cst_38 = arith.constant 9.99999974E-6 : f32
    %50 = vector.broadcast %cst_38 : f32 to vector<128x1xf32>
    %51 = arith.addf %49, %50 : vector<128x1xf32>
    %52 = math.rsqrt %51 : vector<128x1xf32>
    %53 = vector.broadcast %52 : vector<128x1xf32> to vector<128x128xf32>
    %54 = arith.mulf %44, %53 : vector<128x128xf32>
    %c0_39 = arith.constant 0 : index
    %c0_40 = arith.constant 0 : index
    %55 = vector.load %arg5[%c0_39, %c0_40] : memref<1x128xf32, #tpu.memory_space<vmem>>, vector<1x128xf32>
    %56 = vector.broadcast %55 : vector<1x128xf32> to vector<128x128xf32>
    %57 = arith.mulf %54, %56 : vector<128x128xf32>
    %c0_41 = arith.constant 0 : index
    %c0_42 = arith.constant 0 : index
    %58 = vector.load %arg6[%c0_41, %c0_42] : memref<1x128xf32, #tpu.memory_space<vmem>>, vector<1x128xf32>
    %59 = vector.broadcast %58 : vector<1x128xf32> to vector<128x128xf32>
    %60 = arith.addf %57, %59 : vector<128x128xf32>
    %c0_43 = arith.constant 0 : index
    %c0_44 = arith.constant 0 : index
    %61 = vector.load %arg7[%c0_43, %c0_44] : memref<128x128xf32, #tpu.memory_space<vmem>>, vector<128x128xf32>
    tpu.vector_store %arg7[%c0_43, %c0_44], %60 {strides = array<i32>} : memref<128x128xf32, #tpu.memory_space<vmem>>, vector<128x128xf32>,
    return
  }
  func.func @transform_0(%arg0: i32) -> (i32, i32) {
    %c0_i32 = arith.constant 0 : i32
    %c0_i32_0 = arith.constant 0 : i32
    return %arg0, %c0_i32 : i32, i32
  }
  func.func @transform_1(%arg0: i32) -> (i32, i32) {
    %c1_i32 = arith.constant 1 : i32
    %0 = arith.addi %arg0, %c1_i32 : i32
    %c4_i32 = arith.constant 4 : i32
    %1 = arith.muli %0, %c4_i32 : i32
    %c0_i32 = arith.constant 0 : i32
    %c0_i32_0 = arith.constant 0 : i32
    return %1, %c0_i32 : i32, i32
  }
  func.func @transform_2(%arg0: i32) -> (i32, i32, i32) {
    %c0_i32 = arith.constant 0 : i32
    %c0_i32_0 = arith.constant 0 : i32
    %c0_i32_1 = arith.constant 0 : i32
    %c0_i32_2 = arith.constant 0 : i32
    return %c0_i32, %c0_i32_0, %c0_i32_1 : i32, i32, i32
  }
  func.func @transform_3(%arg0: i32) -> (i32, i32) {
    %c0_i32 = arith.constant 0 : i32
    %c0_i32_0 = arith.constant 0 : i32
    %c0_i32_1 = arith.constant 0 : i32
    return %c0_i32, %c0_i32_0 : i32, i32
  }
  func.func @transform_4(%arg0: i32) -> (i32, i32) {
    %c0_i32 = arith.constant 0 : i32
    %c0_i32_0 = arith.constant 0 : i32
    %c0_i32_1 = arith.constant 0 : i32
    return %c0_i32, %c0_i32_0 : i32, i32
  }
  func.func @transform_5(%arg0: i32) -> (i32, i32) {
    %c0_i32 = arith.constant 0 : i32
    %c0_i32_0 = arith.constant 0 : i32
    %c0_i32_1 = arith.constant 0 : i32
    return %c0_i32, %c0_i32_0 : i32, i32
  }
  func.func @transform_6(%arg0: i32) -> (i32, i32) {
    %c0_i32 = arith.constant 0 : i32
    %c0_i32_0 = arith.constant 0 : i32
    return %arg0, %c0_i32 : i32, i32
  }
}

</mosaic_0001>

<llo_original>
// kernel: tds_conv2d_block.1
$region0: #{tds_conv2d_block.1}
  #allocation0 [shape = 'u32[]', space=smem, size = 0x4, offset = 0x4, fixed_abs, tag = 'smem constant byte address 0x4 - core index']
  #allocation1 [shape = 'u32[72,128]{1,0:T(1,128)}', space=vmem, size = 0x9000, scoped, tag = 'internal scratch']
  #allocation2 [shape = 'bf16[160,128]{1,0:T(8,128)(2,1)}', space=vmem, size = 0xa000, scoped, tag = 'scratch operand']
  %s0 = inlined_call_operand.vmem [shape: f32[288,128], index: 0, kind: input, shape index: {}, may-alias: {0,1}]
  %s1 = inlined_call_operand.vmem [shape: f32[288,128], index: 1, kind: input, shape index: {}, may-alias: {0,1}]
  %s2 = inlined_call_operand.vmem [shape: bf16[5,128,128], index: 2, kind: input, shape index: {}]
  %s3 = inlined_call_operand.vmem [shape: f32[1,128], index: 3, kind: input, shape index: {}]
  %s4 = inlined_call_operand.vmem [shape: f32[1,128], index: 4, kind: input, shape index: {}]
  %s5 = inlined_call_operand.vmem [shape: f32[1,128], index: 5, kind: input, shape index: {}]
  %s6 = inlined_call_operand.hbm [shape: f32[256,128], index: 6, kind: output, shape index: {}]
  %s7 = sld [smem:[#allocation0]]
  $region57: #{tds_conv2d_block.1} parent=0
    _
  %s9 = ssub.s32 1, %s7
  %s10 = scalar_select 0, %s9, %s7
  $region1: #{tds_conv2d_block.1} parent=0
    #allocation3 [shape = 'u8[131072]{0}', space=vmem, size = 0x20000, scoped, tag = 'output window, operand 0']
    #allocation4 [shape = 's32[2]{0}', space=sflag, size = 0x8, scoped, tag = 'scoped memory for tds_conv2d_block.1']
    %11 = vsyncpa [#allocation4], 0
    %s12 = scalar_lea.sflag [#allocation4], 1
    %13 = vsyncpa %s12, 0
    loop: start=0, step=1, limit=4
    $region2: #{tds_conv2d_block.1} parent=1 // loop_pre_header
      _
    $region3: #{tds_conv2d_block.1} parent=1 // loop_header
      %s15 = sphi 0, %s19
      %p16 = scmp.ge.s32.totalorder %s15, 4
      %s25 = sphi 0, %s27
      %s28 = sphi 0, %s25
      %s29 = sphi 0, %s28
      %s45 = sphi 0, %s29
      %s55 = sphi 0, %s57
      %s58 = sphi 0, %s55
      %s59 = sphi 0, %s58
      %s75 = sphi 0, %s59
      %s79 = sphi 0, %s79
      %s81 = sphi 0, %s79
      %s82 = sphi 0, %s81
      %s96 = sphi 0, %s82
      %s100 = sphi 0, %s100
      %s102 = sphi 0, %s100
      %s103 = sphi 0, %s102
      %s117 = sphi 0, %s103
      %s121 = sphi 0, %s121
      %s123 = sphi 0, %s121
      %s124 = sphi 0, %s123
      %s138 = sphi 0, %s124
      %s142 = sphi 0, %s142
      %s144 = sphi 0, %s142
      %s145 = sphi 0, %s144
      %s159 = sphi 0, %s145
      %s165 = sphi 0, %s167
      %s168 = sphi 0, %s165
      %s169 = sphi 0, %s168
      %s185 = sphi 0, %s169
    $region4: #{tds_conv2d_block.1} parent=1 // loop_header_branch
      %18 = sbr.rel (%p16) target = $region8
    $region5: #{tds_conv2d_block.1} parent=1 // loop_body
      %s20 = ssub.s32 %s15, 1
      %s21 = ssub.s32 %s15, 2
      %s22 = sadd.s32 %s15, 1
      %s23 = ssub.s32 %s15, %s22
      %p24 = scmp.eq.s32.totalorder %s23, 0
      %s26 = sadd.s32 %s25, 1
      %s27 = scalar_select %p24, %s25, %s26
      %p30 = pneg %p24
      %p31 = scmp.eq.s32.totalorder %s15, 1
      %p32 = por %p30, %p31
      %p33 = scmp.ne.s32.totalorder %s25, %s28
      %p34 = scmp.eq.s32.totalorder %s15, 0
      %p35 = por %p33, %p34
      %p36 = scmp.ne.s32.totalorder %s25, %s28
      %p37 = scmp.eq.s32.totalorder %s20, 1
      %p38 = por %p36, %p37
      %p39 = scmp.ne.s32.totalorder %s28, %s29
      %p40 = scmp.eq.s32.totalorder %s20, 0
      %p41 = por %p39, %p40
      %p42 = scmp.ne.s32.totalorder %s28, %s29
      %p43 = scmp.eq.s32.totalorder %s21, 1
      %p44 = por %p42, %p43
      %p46 = scmp.ne.s32.totalorder %s29, %s45
      %p47 = scmp.eq.s32.totalorder %s21, 0
      %p48 = por %p46, %p47
      %s49 = sadd.s32 %s15, 1
      %s50 = smul.u32 %s49, 4
      %s51 = sadd.s32 %s22, 1
      %s52 = smul.u32 %s51, 4
      %s53 = ssub.s32 %s50, %s52
      %p54 = scmp.eq.s32.totalorder %s53, 0
      %s56 = sadd.s32 %s55, 1
      %s57 = scalar_select %p54, %s55, %s56
      %p60 = pneg %p54
      %p61 = scmp.eq.s32.totalorder %s15, 1
      %p62 = por %p60, %p61
      %p63 = scmp.ne.s32.totalorder %s55, %s58
      %p64 = scmp.eq.s32.totalorder %s15, 0
      %p65 = por %p63, %p64
      %p66 = scmp.ne.s32.totalorder %s55, %s58
      %p67 = scmp.eq.s32.totalorder %s20, 1
      %p68 = por %p66, %p67
      %p69 = scmp.ne.s32.totalorder %s58, %s59
      %p70 = scmp.eq.s32.totalorder %s20, 0
      %p71 = por %p69, %p70
      %p72 = scmp.ne.s32.totalorder %s58, %s59
      %p73 = scmp.eq.s32.totalorder %s21, 1
      %p74 = por %p72, %p73
      %p76 = scmp.ne.s32.totalorder %s59, %s75
      %p77 = scmp.eq.s32.totalorder %s21, 0
      %p78 = por %p76, %p77
      %s80 = sadd.s32 %s79, 1
      %p83 = scmp.eq.s32.totalorder %s15, 1
      %p84 = scmp.ne.s32.totalorder %s79, %s81
      %p85 = scmp.eq.s32.totalorder %s15, 0
      %p86 = por %p84, %p85
      %p87 = scmp.ne.s32.totalorder %s79, %s81
      %p88 = scmp.eq.s32.totalorder %s20, 1
      %p89 = por %p87, %p88
      %p90 = scmp.ne.s32.totalorder %s81, %s82
      %p91 = scmp.eq.s32.totalorder %s20, 0
      %p92 = por %p90, %p91
      %p93 = scmp.ne.s32.totalorder %s81, %s82
      %p94 = scmp.eq.s32.totalorder %s21, 1
      %p95 = por %p93, %p94
      %p97 = scmp.ne.s32.totalorder %s82, %s96
      %p98 = scmp.eq.s32.totalorder %s21, 0
      %p99 = por %p97, %p98
      %s101 = sadd.s32 %s100, 1
      %p104 = scmp.eq.s32.totalorder %s15, 1
      %p105 = scmp.ne.s32.totalorder %s100, %s102
      %p106 = scmp.eq.s32.totalorder %s15, 0
      %p107 = por %p105, %p106
      %p108 = scmp.ne.s32.totalorder %s100, %s102
      %p109 = scmp.eq.s32.totalorder %s20, 1
      %p110 = por %p108, %p109
      %p111 = scmp.ne.s32.totalorder %s102, %s103
      %p112 = scmp.eq.s32.totalorder %s20, 0
      %p113 = por %p111, %p112
      %p114 = scmp.ne.s32.totalorder %s102, %s103
      %p115 = scmp.eq.s32.totalorder %s21, 1
      %p116 = por %p114, %p115
      %p118 = scmp.ne.s32.totalorder %s103, %s117
      %p119 = scmp.eq.s32.totalorder %s21, 0
      %p120 = por %p118, %p119
      %s122 = sadd.s32 %s121, 1
      %p125 = scmp.eq.s32.totalorder %s15, 1
      %p126 = scmp.ne.s32.totalorder %s121, %s123
      %p127 = scmp.eq.s32.totalorder %s15, 0
      %p128 = por %p126, %p127
      %p129 = scmp.ne.s32.totalorder %s121, %s123
      %p130 = scmp.eq.s32.totalorder %s20, 1
      %p131 = por %p129, %p130
      %p132 = scmp.ne.s32.totalorder %s123, %s124
      %p133 = scmp.eq.s32.totalorder %s20, 0
      %p134 = por %p132, %p133
      %p135 = scmp.ne.s32.totalorder %s123, %s124
      %p136 = scmp.eq.s32.totalorder %s21, 1
      %p137 = por %p135, %p136
      %p139 = scmp.ne.s32.totalorder %s124, %s138
      %p140 = scmp.eq.s32.totalorder %s21, 0
      %p141 = por %p139, %p140
      %s143 = sadd.s32 %s142, 1
      %p146 = scmp.eq.s32.totalorder %s15, 1
      %p147 = scmp.ne.s32.totalorder %s142, %s144
      %p148 = scmp.eq.s32.totalorder %s15, 0
      %p149 = por %p147, %p148
      %p150 = scmp.ne.s32.totalorder %s142, %s144
      %p151 = scmp.eq.s32.totalorder %s20, 1
      %p152 = por %p150, %p151
      %p153 = scmp.ne.s32.totalorder %s144, %s145
      %p154 = scmp.eq.s32.totalorder %s20, 0
      %p155 = por %p153, %p154
      %p156 = scmp.ne.s32.totalorder %s144, %s145
      %p157 = scmp.eq.s32.totalorder %s21, 1
      %p158 = por %p156, %p157
      %p160 = scmp.ne.s32.totalorder %s145, %s159
      %p161 = scmp.eq.s32.totalorder %s21, 0
      %p162 = por %p160, %p161
      %s163 = ssub.s32 %s15, %s22
      %p164 = scmp.eq.s32.totalorder %s163, 0
      %s166 = sadd.s32 %s165, 1
      %s167 = scalar_select %p164, %s165, %s166
      %p170 = pneg %p164
      %p171 = scmp.eq.s32.totalorder %s15, 1
      %p172 = por %p170, %p171
      %p173 = scmp.ne.s32.totalorder %s165, %s168
      %p174 = scmp.eq.s32.totalorder %s15, 0
      %p175 = por %p173, %p174
      %p176 = scmp.ne.s32.totalorder %s165, %s168
      %p177 = scmp.eq.s32.totalorder %s20, 1
      %p178 = por %p176, %p177
      %p179 = scmp.ne.s32.totalorder %s168, %s169
      %p180 = scmp.eq.s32.totalorder %s20, 0
      %p181 = por %p179, %p180
      %p182 = scmp.ne.s32.totalorder %s168, %s169
      %p183 = scmp.eq.s32.totalorder %s21, 1
      %p184 = por %p182, %p183
      %p186 = scmp.ne.s32.totalorder %s169, %s185
      %p187 = scmp.eq.s32.totalorder %s21, 0
      %p188 = por %p186, %p187
      %p189 = scmp.le.s32.totalorder 1, %s15
      %p190 = scmp.lt.s32.totalorder %s15, 3
      %p191 = pnand %p189, %p190
      %p192 = pneg %p191
      // Predicated region
      $region9: #{tds_conv2d_block.1} parent=5 // pred_check
        _
      $region10: #{tds_conv2d_block.1} parent=5 // pred_check_branch
        %194 = sbr.rel (%p191) target = $region12
      $region11: #{tds_conv2d_block.1} parent=5 // pred_region
        %s195 = ssub.s32 %s15, 1
        // Predicated region
        $region13: #{tds_conv2d_block.1} parent=11 // pred_check
          %p196 = pneg %p92
        $region14: #{tds_conv2d_block.1} parent=11 // pred_check_branch
          %198 = sbr.rel (%p196) target = $region16
        $region15: #{tds_conv2d_block.1} parent=11 // pred_region
          _
        $region16: #{tds_conv2d_block.1} parent=11 // pred_fallthru
          _
        // Predicated region
        $region17: #{tds_conv2d_block.1} parent=11 // pred_check
          %p199 = pneg %p113
        $region18: #{tds_conv2d_block.1} parent=11 // pred_check_branch
          %201 = sbr.rel (%p199) target = $region20
        $region19: #{tds_conv2d_block.1} parent=11 // pred_region
          _
        $region20: #{tds_conv2d_block.1} parent=11 // pred_fallthru
          _
        // Predicated region
        $region21: #{tds_conv2d_block.1} parent=11 // pred_check
          %p202 = pneg %p134
        $region22: #{tds_conv2d_block.1} parent=11 // pred_check_branch
          %204 = sbr.rel (%p202) target = $region24
        $region23: #{tds_conv2d_block.1} parent=11 // pred_region
          _
        $region24: #{tds_conv2d_block.1} parent=11 // pred_fallthru
          _
        // Predicated region
        $region25: #{tds_conv2d_block.1} parent=11 // pred_check
          %p205 = pneg %p155
        $region26: #{tds_conv2d_block.1} parent=11 // pred_check_branch
          %207 = sbr.rel (%p205) target = $region28
        $region27: #{tds_conv2d_block.1} parent=11 // pred_region
          _
        $region28: #{tds_conv2d_block.1} parent=11 // pred_fallthru
          _
      $region12: #{tds_conv2d_block.1} parent=5 // pred_fallthru
        _
      %p208 = scmp.lt.s32.totalorder %s15, 2
      // Predicated region
      $region29: #{tds_conv2d_block.1} parent=5 // pred_check
        %p209 = pneg %p208
      $region30: #{tds_conv2d_block.1} parent=5 // pred_check_branch
        %211 = sbr.rel (%p209) target = $region32
      $region31: #{tds_conv2d_block.1} parent=5 // pred_region
        // Predicated region
        $region33: #{tds_conv2d_block.1} parent=31 // pred_check
          %p212 = pneg %p35
        $region34: #{tds_conv2d_block.1} parent=31 // pred_check_branch
          %214 = sbr.rel (%p212) target = $region36
        $region35: #{tds_conv2d_block.1} parent=31 // pred_region
          %s215 = smul.u32 16, %s15
          %s216 = ssub.s32 36, %s215
          %p217 = scmp.lt.s32.totalorder %s216, 16
          %s218 = scalar_select %p217, %s216, 16
          %s219 = smul.u32 8, %s218
          %p220 = scmp.lt.s32.totalorder %s215, 35
          %s221 = scalar_select %p220, %s215, 35
          %s222 = smul.addr %s221, 8
          %s223 = scalar_lea.vmem %s0, %s222
          %s224 = smul.u32 16, %s15
          %s225 = ssub.s32 36, %s224
          %p226 = scmp.lt.s32.totalorder %s225, 16
          %s227 = scalar_select %p226, %s225, 16
          %s228 = smul.u32 8, %s227
        $region36: #{tds_conv2d_block.1} parent=31 // pred_fallthru
          _
        // Predicated region
        $region37: #{tds_conv2d_block.1} parent=31 // pred_check
          %p229 = pneg %p65
        $region38: #{tds_conv2d_block.1} parent=31 // pred_check_branch
          %231 = sbr.rel (%p229) target = $region40
        $region39: #{tds_conv2d_block.1} parent=31 // pred_region
          %s232 = sadd.s32 %s15, 1
          %s233 = smul.u32 %s232, 4
          %s234 = smul.u32 4, %s233
          %p235 = scmp.lt.s32.totalorder %s234, 35
          %s236 = scalar_select %p235, %s234, 35
          %s237 = smul.addr %s236, 8
          %s238 = scalar_lea.vmem %s1, %s237
          %s239 = sadd.s32 %s15, 1
          %s240 = smul.u32 %s239, 4
          %s241 = smul.u32 4, %s240
        $region40: #{tds_conv2d_block.1} parent=31 // pred_fallthru
          _
      $region32: #{tds_conv2d_block.1} parent=5 // pred_fallthru
        _
      %p242 = scmp.le.s32.totalorder 1, %s15
      %p243 = scmp.lt.s32.totalorder %s15, 3
      %p244 = pnand %p242, %p243
      %p245 = pneg %p244
      // Predicated region
      $region41: #{tds_conv2d_block.1} parent=5 // pred_check
        _
      $region42: #{tds_conv2d_block.1} parent=5 // pred_check_branch
        %247 = sbr.rel (%p244) target = $region44
      $region43: #{tds_conv2d_block.1} parent=5 // pred_region
        %s248 = ssub.s32 %s15, 1
        %s249 = smul.u32 16, %s20
        %s250 = ssub.s32 36, %s249
        %p251 = scmp.lt.s32.totalorder %s250, 16
        %s252 = scalar_select %p251, %s250, 16
        %s253 = smul.u32 8, %s252
        %p254 = scmp.lt.s32.totalorder %s249, 35
        %s255 = scalar_select %p254, %s249, 35
        %s256 = smul.addr %s255, 8
        %s257 = scalar_lea.vmem %s0, %s256
        %p258 = pneg %p41
        %p259 = pneg %p38
        %s260 = sadd.s32 %s20, 1
        %s261 = smul.u32 %s260, 4
        %s262 = smul.u32 4, %s261
        %p263 = scmp.lt.s32.totalorder %s262, 35
        %s264 = scalar_select %p263, %s262, 35
        %s265 = smul.addr %s264, 8
        %s266 = scalar_lea.vmem %s1, %s265
        %p267 = pneg %p71
        %p268 = pneg %p68
        %p269 = pneg %p92
        %p270 = pneg %p89
        %p271 = pneg %p113
        %p272 = pneg %p110
        %p273 = pneg %p134
        %p274 = pneg %p131
        %p275 = pneg %p155
        %p276 = pneg %p152
        %p277 = pneg %p181
        %p278 = pneg %p178
        %s279 = sand.u32 %s168, 1
        %s280 = scalar_lea.sflag [#allocation4], %s279
        %s281 = sand.u32 %s168, 1
        %s282 = smul.addr %s281, 128
        %s283 = scalar_lea.vmem [#allocation3], %s282
        %s284 = smul.u32 16, %s20
        %s285 = ssub.s32 36, %s284
        %p286 = scmp.lt.s32.totalorder %s285, 16
        %s287 = scalar_select %p286, %s285, 16
        %s288 = smul.u32 8, %s287
        %p289 = scmp.lt.s32.totalorder %s284, 35
        %s290 = scalar_select %p289, %s284, 35
        %s291 = smul.addr %s290, 8
        %s292 = scalar_lea.vmem %s0, %s291
        %s293 = smul.u32 16, %s20
        %s294 = ssub.s32 36, %s293
        %p295 = scmp.lt.s32.totalorder %s294, 16
        %s296 = scalar_select %p295, %s294, 16
        %s297 = smul.u32 8, %s296
        %s298 = sadd.s32 %s20, 1
        %s299 = smul.u32 %s298, 4
        %s300 = smul.u32 4, %s299
        %p301 = scmp.lt.s32.totalorder %s300, 35
        %s302 = scalar_select %p301, %s300, 35
        %s303 = smul.addr %s302, 8
        %s304 = scalar_lea.vmem %s1, %s303
        %s305 = sadd.s32 %s20, 1
        %s306 = smul.u32 %s305, 4
        %s307 = smul.u32 4, %s306
        %s308 = smul.u32 16, %s20
        %v309 = vld [vmem:[%s292] sm:$0xff]
        %v310 = vld [vmem:[%s292 + $0x8] sm:$0xff]
        %v311 = vld [vmem:[%s292 + $0x10] sm:$0xff]
        %v312 = vld [vmem:[%s292 + $0x18] sm:$0xff]
        %v313 = vld [vmem:[%s292 + $0x20] sm:$0xff]
        %v314 = vld [vmem:[%s292 + $0x28] sm:$0xff]
        %v315 = vld [vmem:[%s292 + $0x30] sm:$0xff]
        %v316 = vld [vmem:[%s292 + $0x38] sm:$0xff]
        %v317 = vld [vmem:[%s292 + $0x40] sm:$0xff]
        %v318 = vld [vmem:[%s292 + $0x48] sm:$0xff]
        %v319 = vld [vmem:[%s292 + $0x50] sm:$0xff]
        %v320 = vld [vmem:[%s292 + $0x58] sm:$0xff]
        %v321 = vld [vmem:[%s292 + $0x60] sm:$0xff]
        %v322 = vld [vmem:[%s292 + $0x68] sm:$0xff]
        %v323 = vld [vmem:[%s292 + $0x70] sm:$0xff]
        %v324 = vld [vmem:[%s292 + $0x78] sm:$0xff]
        %v325 = vpack.c.bf16 %v309, %v309
        %v326 = vpack.c.bf16 %v310, %v310
        %v327 = vpack.c.bf16 %v311, %v311
        %v328 = vpack.c.bf16 %v312, %v312
        %v329 = vpack.c.bf16 %v313, %v313
        %v330 = vpack.c.bf16 %v314, %v314
        %v331 = vpack.c.bf16 %v315, %v315
        %v332 = vpack.c.bf16 %v316, %v316
        %v333 = vpack.c.bf16 %v317, %v317
        %v334 = vpack.c.bf16 %v318, %v318
        %v335 = vpack.c.bf16 %v319, %v319
        %v336 = vpack.c.bf16 %v320, %v320
        %v337 = vpack.c.bf16 %v321, %v321
        %v338 = vpack.c.bf16 %v322, %v322
        %v339 = vpack.c.bf16 %v323, %v323
        %v340 = vpack.c.bf16 %v324, %v324
        %341 = vst [vmem:[#allocation2] sm:$0xf] %v325
        %342 = vst [vmem:[#allocation2 + $0x4] sm:$0xf] %v326
        %343 = vst [vmem:[#allocation2 + $0x8] sm:$0xf] %v327
        %344 = vst [vmem:[#allocation2 + $0xc] sm:$0xf] %v328
        %345 = vst [vmem:[#allocation2 + $0x10] sm:$0xf] %v329
        %346 = vst [vmem:[#allocation2 + $0x14] sm:$0xf] %v330
        %347 = vst [vmem:[#allocation2 + $0x18] sm:$0xf] %v331
        %348 = vst [vmem:[#allocation2 + $0x1c] sm:$0xf] %v332
        %349 = vst [vmem:[#allocation2 + $0x20] sm:$0xf] %v333
        %350 = vst [vmem:[#allocation2 + $0x24] sm:$0xf] %v334
        %351 = vst [vmem:[#allocation2 + $0x28] sm:$0xf] %v335
        %352 = vst [vmem:[#allocation2 + $0x2c] sm:$0xf] %v336
        %353 = vst [vmem:[#allocation2 + $0x30] sm:$0xf] %v337
        %354 = vst [vmem:[#allocation2 + $0x34] sm:$0xf] %v338
        %355 = vst [vmem:[#allocation2 + $0x38] sm:$0xf] %v339
        %356 = vst [vmem:[#allocation2 + $0x3c] sm:$0xf] %v340
        %v357 = vld [vmem:[%s304] sm:$0xff]
        %v358 = vld [vmem:[%s304 + $0x8] sm:$0xff]
        %v359 = vld [vmem:[%s304 + $0x10] sm:$0xff]
        %v360 = vld [vmem:[%s304 + $0x18] sm:$0xff]
        %v361 = vpack.c.bf16 %v357, %v357
        %v362 = vpack.c.bf16 %v358, %v358
        %v363 = vpack.c.bf16 %v359, %v359
        %v364 = vpack.c.bf16 %v360, %v360
        %365 = vst [vmem:[#allocation2 + $0x40] sm:$0xf] %v361
        %366 = vst [vmem:[#allocation2 + $0x44] sm:$0xf] %v362
        %367 = vst [vmem:[#allocation2 + $0x48] sm:$0xf] %v363
        %368 = vst [vmem:[#allocation2 + $0x4c] sm:$0xf] %v364
        %v369 = vld [vmem:[#allocation2] sm:$0xf]
        %v370 = vld [vmem:[#allocation2 + $0x4] sm:$0xf]
        %v371 = vld [vmem:[#allocation2 + $0x8] sm:$0xf]
        %v372 = vld [vmem:[#allocation2 + $0xc] sm:$0xf]
        %v373 = vld [vmem:[#allocation2 + $0x10] sm:$0xf]
        %v374 = vld [vmem:[#allocation2 + $0x14] sm:$0xf]
        %v375 = vld [vmem:[#allocation2 + $0x18] sm:$0xf]
        %v376 = vld [vmem:[#allocation2 + $0x1c] sm:$0xf]
        %v377 = vld [vmem:[#allocation2 + $0x20] sm:$0xf]
        %v378 = vld [vmem:[#allocation2 + $0x24] sm:$0xf]
        %v379 = vld [vmem:[#allocation2 + $0x28] sm:$0xf]
        %v380 = vld [vmem:[#allocation2 + $0x2c] sm:$0xf]
        %v381 = vld [vmem:[#allocation2 + $0x30] sm:$0xf]
        %v382 = vld [vmem:[#allocation2 + $0x34] sm:$0xf]
        %v383 = vld [vmem:[#allocation2 + $0x38] sm:$0xf]
        %v384 = vld [vmem:[#allocation2 + $0x3c] sm:$0xf]
        %v385 = vld [vmem:[%s2] sm:$0xf]
        %v386 = vld [vmem:[%s2 + $0x4] sm:$0xf]
        %v387 = vld [vmem:[%s2 + $0x8] sm:$0xf]
        %v388 = vld [vmem:[%s2 + $0xc] sm:$0xf]
        %v389 = vld [vmem:[%s2 + $0x10] sm:$0xf]
        %v390 = vld [vmem:[%s2 + $0x14] sm:$0xf]
        %v391 = vld [vmem:[%s2 + $0x18] sm:$0xf]
        %v392 = vld [vmem:[%s2 + $0x1c] sm:$0xf]
        %v393 = vld [vmem:[%s2 + $0x20] sm:$0xf]
        %v394 = vld [vmem:[%s2 + $0x24] sm:$0xf]
        %v395 = vld [vmem:[%s2 + $0x28] sm:$0xf]
        %v396 = vld [vmem:[%s2 + $0x2c] sm:$0xf]
        %v397 = vld [vmem:[%s2 + $0x30] sm:$0xf]
        %v398 = vld [vmem:[%s2 + $0x34] sm:$0xf]
        %v399 = vld [vmem:[%s2 + $0x38] sm:$0xf]
        %v400 = vld [vmem:[%s2 + $0x3c] sm:$0xf]
        %v401 = vld [vmem:[#allocation2 + $0x40] sm:$0xf]
        %s402 = scalar_lea.vmem %s2, 64
        %v403 = vld [vmem:[%s402] sm:$0xf]
        %v404 = vld [vmem:[%s402 + $0x4] sm:$0xf]
        %v405 = vld [vmem:[%s402 + $0x8] sm:$0xf]
        %v406 = vld [vmem:[%s402 + $0xc] sm:$0xf]
        %v407 = vld [vmem:[%s402 + $0x10] sm:$0xf]
        %v408 = vld [vmem:[%s402 + $0x14] sm:$0xf]
        %v409 = vld [vmem:[%s402 + $0x18] sm:$0xf]
        %v410 = vld [vmem:[%s402 + $0x1c] sm:$0xf]
        %v411 = vld [vmem:[%s402 + $0x20] sm:$0xf]
        %v412 = vld [vmem:[%s402 + $0x24] sm:$0xf]
        %v413 = vld [vmem:[%s402 + $0x28] sm:$0xf]
        %v414 = vld [vmem:[%s402 + $0x2c] sm:$0xf]
        %v415 = vld [vmem:[%s402 + $0x30] sm:$0xf]
        %v416 = vld [vmem:[%s402 + $0x34] sm:$0xf]
        %v417 = vld [vmem:[%s402 + $0x38] sm:$0xf]
        %v418 = vld [vmem:[%s402 + $0x3c] sm:$0xf]
        %v435 = vunpack.c.l.b16 %v370
        %v436 = vunpack.c.l.b16 %v371
        %v437 = vunpack.c.l.b16 %v372
        %v438 = vunpack.c.l.b16 %v373
        %v439 = vunpack.c.l.b16 %v374
        %v440 = vunpack.c.l.b16 %v375
        %v441 = vunpack.c.l.b16 %v376
        %v442 = vunpack.c.l.b16 %v377
        %v443 = vunpack.c.l.b16 %v378
        %v444 = vunpack.c.l.b16 %v379
        %v445 = vunpack.c.l.b16 %v380
        %v446 = vunpack.c.l.b16 %v381
        %v447 = vunpack.c.l.b16 %v382
        %v448 = vunpack.c.l.b16 %v383
        %v449 = vunpack.c.l.b16 %v384
        %v450 = vunpack.c.l.b16 %v401
        %v451 = vpack.c.b16 %v436, %v435
        %v452 = vpack.c.b16 %v438, %v437
        %v453 = vpack.c.b16 %v440, %v439
        %v454 = vpack.c.b16 %v442, %v441
        %v455 = vpack.c.b16 %v444, %v443
        %v456 = vpack.c.b16 %v446, %v445
        %v457 = vpack.c.b16 %v448, %v447
        %v458 = vpack.c.b16 %v450, %v449
        %v483 = vunpack.c.l.b16 %v403
        %v484 = vunpack.c.l.b16 %v404
        %v485 = vunpack.c.l.b16 %v405
        %v486 = vunpack.c.l.b16 %v406
        %v487 = vunpack.c.l.b16 %v407
        %v488 = vunpack.c.l.b16 %v408
        %v489 = vunpack.c.l.b16 %v409
        %v490 = vunpack.c.l.b16 %v410
        %v491 = vunpack.c.l.b16 %v411
        %v492 = vunpack.c.l.b16 %v412
        %v493 = vunpack.c.l.b16 %v413
        %v494 = vunpack.c.l.b16 %v414
        %v495 = vunpack.c.l.b16 %v415
        %v496 = vunpack.c.l.b16 %v416
        %v497 = vunpack.c.l.b16 %v417
        %v498 = vunpack.c.l.b16 %v418
        %v499 = vpack.c.b16 %v484, %v483
        %v500 = vpack.c.b16 %v486, %v485
        %v501 = vpack.c.b16 %v488, %v487
        %v502 = vpack.c.b16 %v490, %v489
        %v503 = vpack.c.b16 %v492, %v491
        %v504 = vpack.c.b16 %v494, %v493
        %v505 = vpack.c.b16 %v496, %v495
        %v506 = vpack.c.b16 %v498, %v497
        %515 = vmatpush.bf16.msra.mxu0 %v506
        %516 = vmatpush.bf16.msra.mxu0 %v505
        %517 = vmatpush.bf16.msra.mxu0 %v504
        %518 = vmatpush.bf16.msra.mxu0 %v503
        %519 = vmatpush.bf16.msra.mxu0 %v502
        %520 = vmatpush.bf16.msra.mxu0 %v501
        %521 = vmatpush.bf16.msra.mxu0 %v500
        %522 = vmatpush.bf16.msra.mxu0 %v499
        %523 = vmatmul.bf16.gmra.mxu0 %v451
        %v524 = vpop.f32.mrf.mxu0
        %v525 = vadd.f32 0.0, %v524
        %v526 = vpop.f32.mrf.mxu0
        %v527 = vadd.f32 0.0, %v526
        %528 = vmatmul.bf16.gmra.mxu0 %v452
        %v529 = vpop.f32.mrf.mxu0
        %v530 = vadd.f32 0.0, %v529
        %v531 = vpop.f32.mrf.mxu0
        %v532 = vadd.f32 0.0, %v531
        %533 = vmatmul.bf16.gmra.mxu0 %v453
        %v534 = vpop.f32.mrf.mxu0
        %v535 = vadd.f32 0.0, %v534
        %v536 = vpop.f32.mrf.mxu0
        %v537 = vadd.f32 0.0, %v536
        %538 = vmatmul.bf16.gmra.mxu0 %v454
        %v539 = vpop.f32.mrf.mxu0
        %v540 = vadd.f32 0.0, %v539
        %v541 = vpop.f32.mrf.mxu0
        %v542 = vadd.f32 0.0, %v541
        %543 = vmatmul.bf16.gmra.mxu0 %v455
        %v544 = vpop.f32.mrf.mxu0
        %v545 = vadd.f32 0.0, %v544
        %v546 = vpop.f32.mrf.mxu0
        %v547 = vadd.f32 0.0, %v546
        %548 = vmatmul.bf16.gmra.mxu0 %v456
        %v549 = vpop.f32.mrf.mxu0
        %v550 = vadd.f32 0.0, %v549
        %v551 = vpop.f32.mrf.mxu0
        %v552 = vadd.f32 0.0, %v551
        %553 = vmatmul.bf16.gmra.mxu0 %v457
        %v554 = vpop.f32.mrf.mxu0
        %v555 = vadd.f32 0.0, %v554
        %v556 = vpop.f32.mrf.mxu0
        %v557 = vadd.f32 0.0, %v556
        %558 = vmatmul.bf16.gmra.mxu0 %v458
        %v559 = vpop.f32.mrf.mxu0
        %v560 = vadd.f32 0.0, %v559
        %v561 = vpop.f32.mrf.mxu0
        %v562 = vadd.f32 0.0, %v561
        %563 = vdwg.mxu0
        %v565 = vunpack.c.l.b16 %v369
        %v566 = vpack.c.b16 %v435, %v565
        %v567 = vpack.c.b16 %v437, %v436
        %v568 = vpack.c.b16 %v439, %v438
        %v569 = vpack.c.b16 %v441, %v440
        %v570 = vpack.c.b16 %v443, %v442
        %v571 = vpack.c.b16 %v445, %v444
        %v572 = vpack.c.b16 %v447, %v446
        %v573 = vpack.c.b16 %v449, %v448
        %v598 = vunpack.c.l.b16 %v385
        %v599 = vunpack.c.l.b16 %v386
        %v600 = vunpack.c.l.b16 %v387
        %v601 = vunpack.c.l.b16 %v388
        %v602 = vunpack.c.l.b16 %v389
        %v603 = vunpack.c.l.b16 %v390
        %v604 = vunpack.c.l.b16 %v391
        %v605 = vunpack.c.l.b16 %v392
        %v606 = vunpack.c.l.b16 %v393
        %v607 = vunpack.c.l.b16 %v394
        %v608 = vunpack.c.l.b16 %v395
        %v609 = vunpack.c.l.b16 %v396
        %v610 = vunpack.c.l.b16 %v397
        %v611 = vunpack.c.l.b16 %v398
        %v612 = vunpack.c.l.b16 %v399
        %v613 = vunpack.c.l.b16 %v400
        %v614 = vpack.c.b16 %v599, %v598
        %v615 = vpack.c.b16 %v601, %v600
        %v616 = vpack.c.b16 %v603, %v602
        %v617 = vpack.c.b16 %v605, %v604
        %v618 = vpack.c.b16 %v607, %v606
        %v619 = vpack.c.b16 %v609, %v608
        %v620 = vpack.c.b16 %v611, %v610
        %v621 = vpack.c.b16 %v613, %v612
        %630 = vmatpush.bf16.msra.mxu0 %v621
        %631 = vmatpush.bf16.msra.mxu0 %v620
        %632 = vmatpush.bf16.msra.mxu0 %v619
        %633 = vmatpush.bf16.msra.mxu0 %v618
        %634 = vmatpush.bf16.msra.mxu0 %v617
        %635 = vmatpush.bf16.msra.mxu0 %v616
        %636 = vmatpush.bf16.msra.mxu0 %v615
        %637 = vmatpush.bf16.msra.mxu0 %v614
        %638 = vmatmul.bf16.gmra.mxu0 %v566
        %v639 = vpop.f32.mrf.mxu0
        %v640 = vadd.f32 %v525, %v639
        %v641 = vpop.f32.mrf.mxu0
        %v642 = vadd.f32 %v527, %v641
        %643 = vmatmul.bf16.gmra.mxu0 %v567
        %v644 = vpop.f32.mrf.mxu0
        %v645 = vadd.f32 %v530, %v644
        %v646 = vpop.f32.mrf.mxu0
        %v647 = vadd.f32 %v532, %v646
        %648 = vmatmul.bf16.gmra.mxu0 %v568
        %v649 = vpop.f32.mrf.mxu0
        %v650 = vadd.f32 %v535, %v649
        %v651 = vpop.f32.mrf.mxu0
        %v652 = vadd.f32 %v537, %v651
        %653 = vmatmul.bf16.gmra.mxu0 %v569
        %v654 = vpop.f32.mrf.mxu0
        %v655 = vadd.f32 %v540, %v654
        %v656 = vpop.f32.mrf.mxu0
        %v657 = vadd.f32 %v542, %v656
        %658 = vmatmul.bf16.gmra.mxu0 %v570
        %v659 = vpop.f32.mrf.mxu0
        %v660 = vadd.f32 %v545, %v659
        %v661 = vpop.f32.mrf.mxu0
        %v662 = vadd.f32 %v547, %v661
        %663 = vmatmul.bf16.gmra.mxu0 %v571
        %v664 = vpop.f32.mrf.mxu0
        %v665 = vadd.f32 %v550, %v664
        %v666 = vpop.f32.mrf.mxu0
        %v667 = vadd.f32 %v552, %v666
        %668 = vmatmul.bf16.gmra.mxu0 %v572
        %v669 = vpop.f32.mrf.mxu0
        %v670 = vadd.f32 %v555, %v669
        %v671 = vpop.f32.mrf.mxu0
        %v672 = vadd.f32 %v557, %v671
        %673 = vmatmul.bf16.gmra.mxu0 %v573
        %v674 = vpop.f32.mrf.mxu0
        %v675 = vadd.f32 %v560, %v674
        %v676 = vpop.f32.mrf.mxu0
        %v677 = vadd.f32 %v562, %v676
        %678 = vdwg.mxu0
        %v679 = vld [vmem:[#allocation2 + $0x8] sm:$0xf]
        %v680 = vld [vmem:[#allocation2 + $0xc] sm:$0xf]
        %v681 = vld [vmem:[#allocation2 + $0x10] sm:$0xf]
        %v682 = vld [vmem:[#allocation2 + $0x14] sm:$0xf]
        %v683 = vld [vmem:[#allocation2 + $0x18] sm:$0xf]
        %v684 = vld [vmem:[#allocation2 + $0x1c] sm:$0xf]
        %v685 = vld [vmem:[#allocation2 + $0x20] sm:$0xf]
        %v686 = vld [vmem:[#allocation2 + $0x24] sm:$0xf]
        %v687 = vld [vmem:[#allocation2 + $0x28] sm:$0xf]
        %v688 = vld [vmem:[#allocation2 + $0x2c] sm:$0xf]
        %v689 = vld [vmem:[#allocation2 + $0x30] sm:$0xf]
        %v690 = vld [vmem:[#allocation2 + $0x34] sm:$0xf]
        %v691 = vld [vmem:[#allocation2 + $0x38] sm:$0xf]
        %v692 = vld [vmem:[#allocation2 + $0x3c] sm:$0xf]
        %v693 = vld [vmem:[#allocation2 + $0x40] sm:$0xf]
        %v694 = vld [vmem:[#allocation2 + $0x44] sm:$0xf]
        %s695 = scalar_lea.vmem %s2, 128
        %v696 = vld [vmem:[%s695] sm:$0xf]
        %v697 = vld [vmem:[%s695 + $0x4] sm:$0xf]
        %v698 = vld [vmem:[%s695 + $0x8] sm:$0xf]
        %v699 = vld [vmem:[%s695 + $0xc] sm:$0xf]
        %v700 = vld [vmem:[%s695 + $0x10] sm:$0xf]
        %v701 = vld [vmem:[%s695 + $0x14] sm:$0xf]
        %v702 = vld [vmem:[%s695 + $0x18] sm:$0xf]
        %v703 = vld [vmem:[%s695 + $0x1c] sm:$0xf]
        %v704 = vld [vmem:[%s695 + $0x20] sm:$0xf]
        %v705 = vld [vmem:[%s695 + $0x24] sm:$0xf]
        %v706 = vld [vmem:[%s695 + $0x28] sm:$0xf]
        %v707 = vld [vmem:[%s695 + $0x2c] sm:$0xf]
        %v708 = vld [vmem:[%s695 + $0x30] sm:$0xf]
        %v709 = vld [vmem:[%s695 + $0x34] sm:$0xf]
        %v710 = vld [vmem:[%s695 + $0x38] sm:$0xf]
        %v711 = vld [vmem:[%s695 + $0x3c] sm:$0xf]
        %v728 = vunpack.c.l.b16 %v679
        %v729 = vunpack.c.l.b16 %v680
        %v730 = vunpack.c.l.b16 %v681
        %v731 = vunpack.c.l.b16 %v682
        %v732 = vunpack.c.l.b16 %v683
        %v733 = vunpack.c.l.b16 %v684
        %v734 = vunpack.c.l.b16 %v685
        %v735 = vunpack.c.l.b16 %v686
        %v736 = vunpack.c.l.b16 %v687
        %v737 = vunpack.c.l.b16 %v688
        %v738 = vunpack.c.l.b16 %v689
        %v739 = vunpack.c.l.b16 %v690
        %v740 = vunpack.c.l.b16 %v691
        %v741 = vunpack.c.l.b16 %v692
        %v742 = vunpack.c.l.b16 %v693
        %v743 = vunpack.c.l.b16 %v694
        %v744 = vpack.c.b16 %v729, %v728
        %v745 = vpack.c.b16 %v731, %v730
        %v746 = vpack.c.b16 %v733, %v732
        %v747 = vpack.c.b16 %v735, %v734
        %v748 = vpack.c.b16 %v737, %v736
        %v749 = vpack.c.b16 %v739, %v738
        %v750 = vpack.c.b16 %v741, %v740
        %v751 = vpack.c.b16 %v743, %v742
        %v776 = vunpack.c.l.b16 %v696
        %v777 = vunpack.c.l.b16 %v697
        %v778 = vunpack.c.l.b16 %v698
        %v779 = vunpack.c.l.b16 %v699
        %v780 = vunpack.c.l.b16 %v700
        %v781 = vunpack.c.l.b16 %v701
        %v782 = vunpack.c.l.b16 %v702
        %v783 = vunpack.c.l.b16 %v703
        %v784 = vunpack.c.l.b16 %v704
        %v785 = vunpack.c.l.b16 %v705
        %v786 = vunpack.c.l.b16 %v706
        %v787 = vunpack.c.l.b16 %v707
        %v788 = vunpack.c.l.b16 %v708
        %v789 = vunpack.c.l.b16 %v709
        %v790 = vunpack.c.l.b16 %v710
        %v791 = vunpack.c.l.b16 %v711
        %v792 = vpack.c.b16 %v777, %v776
        %v793 = vpack.c.b16 %v779, %v778
        %v794 = vpack.c.b16 %v781, %v780
        %v795 = vpack.c.b16 %v783, %v782
        %v796 = vpack.c.b16 %v785, %v784
        %v797 = vpack.c.b16 %v787, %v786
        %v798 = vpack.c.b16 %v789, %v788
        %v799 = vpack.c.b16 %v791, %v790
        %808 = vmatpush.bf16.msra.mxu0 %v799
        %809 = vmatpush.bf16.msra.mxu0 %v798
        %810 = vmatpush.bf16.msra.mxu0 %v797
        %811 = vmatpush.bf16.msra.mxu0 %v796
        %812 = vmatpush.bf16.msra.mxu0 %v795
        %813 = vmatpush.bf16.msra.mxu0 %v794
        %814 = vmatpush.bf16.msra.mxu0 %v793
        %815 = vmatpush.bf16.msra.mxu0 %v792
        %816 = vmatmul.bf16.gmra.mxu0 %v744
        %v817 = vpop.f32.mrf.mxu0
        %v818 = vadd.f32 0.0, %v817
        %v819 = vpop.f32.mrf.mxu0
        %v820 = vadd.f32 0.0, %v819
        %821 = vmatmul.bf16.gmra.mxu0 %v745
        %v822 = vpop.f32.mrf.mxu0
        %v823 = vadd.f32 0.0, %v822
        %v824 = vpop.f32.mrf.mxu0
        %v825 = vadd.f32 0.0, %v824
        %826 = vmatmul.bf16.gmra.mxu0 %v746
        %v827 = vpop.f32.mrf.mxu0
        %v828 = vadd.f32 0.0, %v827
        %v829 = vpop.f32.mrf.mxu0
        %v830 = vadd.f32 0.0, %v829
        %831 = vmatmul.bf16.gmra.mxu0 %v747
        %v832 = vpop.f32.mrf.mxu0
        %v833 = vadd.f32 0.0, %v832
        %v834 = vpop.f32.mrf.mxu0
        %v835 = vadd.f32 0.0, %v834
        %836 = vmatmul.bf16.gmra.mxu0 %v748
        %v837 = vpop.f32.mrf.mxu0
        %v838 = vadd.f32 0.0, %v837
        %v839 = vpop.f32.mrf.mxu0
        %v840 = vadd.f32 0.0, %v839
        %841 = vmatmul.bf16.gmra.mxu0 %v749
        %v842 = vpop.f32.mrf.mxu0
        %v843 = vadd.f32 0.0, %v842
        %v844 = vpop.f32.mrf.mxu0
        %v845 = vadd.f32 0.0, %v844
        %846 = vmatmul.bf16.gmra.mxu0 %v750
        %v847 = vpop.f32.mrf.mxu0
        %v848 = vadd.f32 0.0, %v847
        %v849 = vpop.f32.mrf.mxu0
        %v850 = vadd.f32 0.0, %v849
        %851 = vmatmul.bf16.gmra.mxu0 %v751
        %v852 = vpop.f32.mrf.mxu0
        %v853 = vadd.f32 0.0, %v852
        %v854 = vpop.f32.mrf.mxu0
        %v855 = vadd.f32 0.0, %v854
        %856 = vdwg.mxu0
        %v857 = vadd.f32 %v640, %v818
        %v858 = vadd.f32 %v642, %v820
        %v859 = vadd.f32 %v645, %v823
        %v860 = vadd.f32 %v647, %v825
        %v861 = vadd.f32 %v650, %v828
        %v862 = vadd.f32 %v652, %v830
        %v863 = vadd.f32 %v655, %v833
        %v864 = vadd.f32 %v657, %v835
        %v865 = vadd.f32 %v660, %v838
        %v866 = vadd.f32 %v662, %v840
        %v867 = vadd.f32 %v665, %v843
        %v868 = vadd.f32 %v667, %v845
        %v869 = vadd.f32 %v670, %v848
        %v870 = vadd.f32 %v672, %v850
        %v871 = vadd.f32 %v675, %v853
        %v872 = vadd.f32 %v677, %v855
        %v873 = vld [vmem:[#allocation2 + $0xc] sm:$0xf]
        %v874 = vld [vmem:[#allocation2 + $0x10] sm:$0xf]
        %v875 = vld [vmem:[#allocation2 + $0x14] sm:$0xf]
        %v876 = vld [vmem:[#allocation2 + $0x18] sm:$0xf]
        %v877 = vld [vmem:[#allocation2 + $0x1c] sm:$0xf]
        %v878 = vld [vmem:[#allocation2 + $0x20] sm:$0xf]
        %v879 = vld [vmem:[#allocation2 + $0x24] sm:$0xf]
        %v880 = vld [vmem:[#allocation2 + $0x28] sm:$0xf]
        %v881 = vld [vmem:[#allocation2 + $0x2c] sm:$0xf]
        %v882 = vld [vmem:[#allocation2 + $0x30] sm:$0xf]
        %v883 = vld [vmem:[#allocation2 + $0x34] sm:$0xf]
        %v884 = vld [vmem:[#allocation2 + $0x38] sm:$0xf]
        %v885 = vld [vmem:[#allocation2 + $0x3c] sm:$0xf]
        %v886 = vld [vmem:[#allocation2 + $0x40] sm:$0xf]
        %v887 = vld [vmem:[#allocation2 + $0x44] sm:$0xf]
        %v888 = vld [vmem:[#allocation2 + $0x48] sm:$0xf]
        %s889 = scalar_lea.vmem %s2, 192
        %v890 = vld [vmem:[%s889] sm:$0xf]
        %v891 = vld [vmem:[%s889 + $0x4] sm:$0xf]
        %v892 = vld [vmem:[%s889 + $0x8] sm:$0xf]
        %v893 = vld [vmem:[%s889 + $0xc] sm:$0xf]
        %v894 = vld [vmem:[%s889 + $0x10] sm:$0xf]
        %v895 = vld [vmem:[%s889 + $0x14] sm:$0xf]
        %v896 = vld [vmem:[%s889 + $0x18] sm:$0xf]
        %v897 = vld [vmem:[%s889 + $0x1c] sm:$0xf]
        %v898 = vld [vmem:[%s889 + $0x20] sm:$0xf]
        %v899 = vld [vmem:[%s889 + $0x24] sm:$0xf]
        %v900 = vld [vmem:[%s889 + $0x28] sm:$0xf]
        %v901 = vld [vmem:[%s889 + $0x2c] sm:$0xf]
        %v902 = vld [vmem:[%s889 + $0x30] sm:$0xf]
        %v903 = vld [vmem:[%s889 + $0x34] sm:$0xf]
        %v904 = vld [vmem:[%s889 + $0x38] sm:$0xf]
        %v905 = vld [vmem:[%s889 + $0x3c] sm:$0xf]
        %v922 = vunpack.c.l.b16 %v873
        %v923 = vunpack.c.l.b16 %v874
        %v924 = vunpack.c.l.b16 %v875
        %v925 = vunpack.c.l.b16 %v876
        %v926 = vunpack.c.l.b16 %v877
        %v927 = vunpack.c.l.b16 %v878
        %v928 = vunpack.c.l.b16 %v879
        %v929 = vunpack.c.l.b16 %v880
        %v930 = vunpack.c.l.b16 %v881
        %v931 = vunpack.c.l.b16 %v882
        %v932 = vunpack.c.l.b16 %v883
        %v933 = vunpack.c.l.b16 %v884
        %v934 = vunpack.c.l.b16 %v885
        %v935 = vunpack.c.l.b16 %v886
        %v936 = vunpack.c.l.b16 %v887
        %v937 = vunpack.c.l.b16 %v888
        %v938 = vpack.c.b16 %v923, %v922
        %v939 = vpack.c.b16 %v925, %v924
        %v940 = vpack.c.b16 %v927, %v926
        %v941 = vpack.c.b16 %v929, %v928
        %v942 = vpack.c.b16 %v931, %v930
        %v943 = vpack.c.b16 %v933, %v932
        %v944 = vpack.c.b16 %v935, %v934
        %v945 = vpack.c.b16 %v937, %v936
        %v970 = vunpack.c.l.b16 %v890
        %v971 = vunpack.c.l.b16 %v891
        %v972 = vunpack.c.l.b16 %v892
        %v973 = vunpack.c.l.b16 %v893
        %v974 = vunpack.c.l.b16 %v894
        %v975 = vunpack.c.l.b16 %v895
        %v976 = vunpack.c.l.b16 %v896
        %v977 = vunpack.c.l.b16 %v897
        %v978 = vunpack.c.l.b16 %v898
        %v979 = vunpack.c.l.b16 %v899
        %v980 = vunpack.c.l.b16 %v900
        %v981 = vunpack.c.l.b16 %v901
        %v982 = vunpack.c.l.b16 %v902
        %v983 = vunpack.c.l.b16 %v903
        %v984 = vunpack.c.l.b16 %v904
        %v985 = vunpack.c.l.b16 %v905
        %v986 = vpack.c.b16 %v971, %v970
        %v987 = vpack.c.b16 %v973, %v972
        %v988 = vpack.c.b16 %v975, %v974
        %v989 = vpack.c.b16 %v977, %v976
        %v990 = vpack.c.b16 %v979, %v978
        %v991 = vpack.c.b16 %v981, %v980
        %v992 = vpack.c.b16 %v983, %v982
        %v993 = vpack.c.b16 %v985, %v984
        %1002 = vmatpush.bf16.msra.mxu0 %v993
        %1003 = vmatpush.bf16.msra.mxu0 %v992
        %1004 = vmatpush.bf16.msra.mxu0 %v991
        %1005 = vmatpush.bf16.msra.mxu0 %v990
        %1006 = vmatpush.bf16.msra.mxu0 %v989
        %1007 = vmatpush.bf16.msra.mxu0 %v988
        %1008 = vmatpush.bf16.msra.mxu0 %v987
        %1009 = vmatpush.bf16.msra.mxu0 %v986
        %1010 = vmatmul.bf16.gmra.mxu0 %v938
        %v1011 = vpop.f32.mrf.mxu0
        %v1012 = vadd.f32 0.0, %v1011
        %v1013 = vpop.f32.mrf.mxu0
        %v1014 = vadd.f32 0.0, %v1013
        %1015 = vmatmul.bf16.gmra.mxu0 %v939
        %v1016 = vpop.f32.mrf.mxu0
        %v1017 = vadd.f32 0.0, %v1016
        %v1018 = vpop.f32.mrf.mxu0
        %v1019 = vadd.f32 0.0, %v1018
        %1020 = vmatmul.bf16.gmra.mxu0 %v940
        %v1021 = vpop.f32.mrf.mxu0
        %v1022 = vadd.f32 0.0, %v1021
        %v1023 = vpop.f32.mrf.mxu0
        %v1024 = vadd.f32 0.0, %v1023
        %1025 = vmatmul.bf16.gmra.mxu0 %v941
        %v1026 = vpop.f32.mrf.mxu0
        %v1027 = vadd.f32 0.0, %v1026
        %v1028 = vpop.f32.mrf.mxu0
        %v1029 = vadd.f32 0.0, %v1028
        %1030 = vmatmul.bf16.gmra.mxu0 %v942
        %v1031 = vpop.f32.mrf.mxu0
        %v1032 = vadd.f32 0.0, %v1031
        %v1033 = vpop.f32.mrf.mxu0
        %v1034 = vadd.f32 0.0, %v1033
        %1035 = vmatmul.bf16.gmra.mxu0 %v943
        %v1036 = vpop.f32.mrf.mxu0
        %v1037 = vadd.f32 0.0, %v1036
        %v1038 = vpop.f32.mrf.mxu0
        %v1039 = vadd.f32 0.0, %v1038
        %1040 = vmatmul.bf16.gmra.mxu0 %v944
        %v1041 = vpop.f32.mrf.mxu0
        %v1042 = vadd.f32 0.0, %v1041
        %v1043 = vpop.f32.mrf.mxu0
        %v1044 = vadd.f32 0.0, %v1043
        %1045 = vmatmul.bf16.gmra.mxu0 %v945
        %v1046 = vpop.f32.mrf.mxu0
        %v1047 = vadd.f32 0.0, %v1046
        %v1048 = vpop.f32.mrf.mxu0
        %v1049 = vadd.f32 0.0, %v1048
        %1050 = vdwg.mxu0
        %v1051 = vadd.f32 %v857, %v1012
        %v1052 = vadd.f32 %v858, %v1014
        %v1053 = vadd.f32 %v859, %v1017
        %v1054 = vadd.f32 %v860, %v1019
        %v1055 = vadd.f32 %v861, %v1022
        %v1056 = vadd.f32 %v862, %v1024
        %v1057 = vadd.f32 %v863, %v1027
        %v1058 = vadd.f32 %v864, %v1029
        %v1059 = vadd.f32 %v865, %v1032
        %v1060 = vadd.f32 %v866, %v1034
        %v1061 = vadd.f32 %v867, %v1037
        %v1062 = vadd.f32 %v868, %v1039
        %v1063 = vadd.f32 %v869, %v1042
        %v1064 = vadd.f32 %v870, %v1044
        %v1065 = vadd.f32 %v871, %v1047
        %v1066 = vadd.f32 %v872, %v1049
        %v1067 = vld [vmem:[#allocation2 + $0x10] sm:$0xf]
        %v1068 = vld [vmem:[#allocation2 + $0x14] sm:$0xf]
        %v1069 = vld [vmem:[#allocation2 + $0x18] sm:$0xf]
        %v1070 = vld [vmem:[#allocation2 + $0x1c] sm:$0xf]
        %v1071 = vld [vmem:[#allocation2 + $0x20] sm:$0xf]
        %v1072 = vld [vmem:[#allocation2 + $0x24] sm:$0xf]
        %v1073 = vld [vmem:[#allocation2 + $0x28] sm:$0xf]
        %v1074 = vld [vmem:[#allocation2 + $0x2c] sm:$0xf]
        %v1075 = vld [vmem:[#allocation2 + $0x30] sm:$0xf]
        %v1076 = vld [vmem:[#allocation2 + $0x34] sm:$0xf]
        %v1077 = vld [vmem:[#allocation2 + $0x38] sm:$0xf]
        %v1078 = vld [vmem:[#allocation2 + $0x3c] sm:$0xf]
        %v1079 = vld [vmem:[#allocation2 + $0x40] sm:$0xf]
        %v1080 = vld [vmem:[#allocation2 + $0x44] sm:$0xf]
        %v1081 = vld [vmem:[#allocation2 + $0x48] sm:$0xf]
        %v1082 = vld [vmem:[#allocation2 + $0x4c] sm:$0xf]
        %s1083 = scalar_lea.vmem %s2, 256
        %v1084 = vld [vmem:[%s1083] sm:$0xf]
        %v1085 = vld [vmem:[%s1083 + $0x4] sm:$0xf]
        %v1086 = vld [vmem:[%s1083 + $0x8] sm:$0xf]
        %v1087 = vld [vmem:[%s1083 + $0xc] sm:$0xf]
        %v1088 = vld [vmem:[%s1083 + $0x10] sm:$0xf]
        %v1089 = vld [vmem:[%s1083 + $0x14] sm:$0xf]
        %v1090 = vld [vmem:[%s1083 + $0x18] sm:$0xf]
        %v1091 = vld [vmem:[%s1083 + $0x1c] sm:$0xf]
        %v1092 = vld [vmem:[%s1083 + $0x20] sm:$0xf]
        %v1093 = vld [vmem:[%s1083 + $0x24] sm:$0xf]
        %v1094 = vld [vmem:[%s1083 + $0x28] sm:$0xf]
        %v1095 = vld [vmem:[%s1083 + $0x2c] sm:$0xf]
        %v1096 = vld [vmem:[%s1083 + $0x30] sm:$0xf]
        %v1097 = vld [vmem:[%s1083 + $0x34] sm:$0xf]
        %v1098 = vld [vmem:[%s1083 + $0x38] sm:$0xf]
        %v1099 = vld [vmem:[%s1083 + $0x3c] sm:$0xf]
        %v1116 = vunpack.c.l.b16 %v1067
        %v1117 = vunpack.c.l.b16 %v1068
        %v1118 = vunpack.c.l.b16 %v1069
        %v1119 = vunpack.c.l.b16 %v1070
        %v1120 = vunpack.c.l.b16 %v1071
        %v1121 = vunpack.c.l.b16 %v1072
        %v1122 = vunpack.c.l.b16 %v1073
        %v1123 = vunpack.c.l.b16 %v1074
        %v1124 = vunpack.c.l.b16 %v1075
        %v1125 = vunpack.c.l.b16 %v1076
        %v1126 = vunpack.c.l.b16 %v1077
        %v1127 = vunpack.c.l.b16 %v1078
        %v1128 = vunpack.c.l.b16 %v1079
        %v1129 = vunpack.c.l.b16 %v1080
        %v1130 = vunpack.c.l.b16 %v1081
        %v1131 = vunpack.c.l.b16 %v1082
        %v1132 = vpack.c.b16 %v1117, %v1116
        %v1133 = vpack.c.b16 %v1119, %v1118
        %v1134 = vpack.c.b16 %v1121, %v1120
        %v1135 = vpack.c.b16 %v1123, %v1122
        %v1136 = vpack.c.b16 %v1125, %v1124
        %v1137 = vpack.c.b16 %v1127, %v1126
        %v1138 = vpack.c.b16 %v1129, %v1128
        %v1139 = vpack.c.b16 %v1131, %v1130
        %v1164 = vunpack.c.l.b16 %v1084
        %v1165 = vunpack.c.l.b16 %v1085
        %v1166 = vunpack.c.l.b16 %v1086
        %v1167 = vunpack.c.l.b16 %v1087
        %v1168 = vunpack.c.l.b16 %v1088
        %v1169 = vunpack.c.l.b16 %v1089
        %v1170 = vunpack.c.l.b16 %v1090
        %v1171 = vunpack.c.l.b16 %v1091
        %v1172 = vunpack.c.l.b16 %v1092
        %v1173 = vunpack.c.l.b16 %v1093
        %v1174 = vunpack.c.l.b16 %v1094
        %v1175 = vunpack.c.l.b16 %v1095
        %v1176 = vunpack.c.l.b16 %v1096
        %v1177 = vunpack.c.l.b16 %v1097
        %v1178 = vunpack.c.l.b16 %v1098
        %v1179 = vunpack.c.l.b16 %v1099
        %v1180 = vpack.c.b16 %v1165, %v1164
        %v1181 = vpack.c.b16 %v1167, %v1166
        %v1182 = vpack.c.b16 %v1169, %v1168
        %v1183 = vpack.c.b16 %v1171, %v1170
        %v1184 = vpack.c.b16 %v1173, %v1172
        %v1185 = vpack.c.b16 %v1175, %v1174
        %v1186 = vpack.c.b16 %v1177, %v1176
        %v1187 = vpack.c.b16 %v1179, %v1178
        %1196 = vmatpush.bf16.msra.mxu0 %v1187
        %1197 = vmatpush.bf16.msra.mxu0 %v1186
        %1198 = vmatpush.bf16.msra.mxu0 %v1185
        %1199 = vmatpush.bf16.msra.mxu0 %v1184
        %1200 = vmatpush.bf16.msra.mxu0 %v1183
        %1201 = vmatpush.bf16.msra.mxu0 %v1182
        %1202 = vmatpush.bf16.msra.mxu0 %v1181
        %1203 = vmatpush.bf16.msra.mxu0 %v1180
        %1204 = vmatmul.bf16.gmra.mxu0 %v1132
        %v1205 = vpop.f32.mrf.mxu0
        %v1206 = vadd.f32 0.0, %v1205
        %v1207 = vpop.f32.mrf.mxu0
        %v1208 = vadd.f32 0.0, %v1207
        %1209 = vmatmul.bf16.gmra.mxu0 %v1133
        %v1210 = vpop.f32.mrf.mxu0
        %v1211 = vadd.f32 0.0, %v1210
        %v1212 = vpop.f32.mrf.mxu0
        %v1213 = vadd.f32 0.0, %v1212
        %1214 = vmatmul.bf16.gmra.mxu0 %v1134
        %v1215 = vpop.f32.mrf.mxu0
        %v1216 = vadd.f32 0.0, %v1215
        %v1217 = vpop.f32.mrf.mxu0
        %v1218 = vadd.f32 0.0, %v1217
        %1219 = vmatmul.bf16.gmra.mxu0 %v1135
        %v1220 = vpop.f32.mrf.mxu0
        %v1221 = vadd.f32 0.0, %v1220
        %v1222 = vpop.f32.mrf.mxu0
        %v1223 = vadd.f32 0.0, %v1222
        %1224 = vmatmul.bf16.gmra.mxu0 %v1136
        %v1225 = vpop.f32.mrf.mxu0
        %v1226 = vadd.f32 0.0, %v1225
        %v1227 = vpop.f32.mrf.mxu0
        %v1228 = vadd.f32 0.0, %v1227
        %1229 = vmatmul.bf16.gmra.mxu0 %v1137
        %v1230 = vpop.f32.mrf.mxu0
        %v1231 = vadd.f32 0.0, %v1230
        %v1232 = vpop.f32.mrf.mxu0
        %v1233 = vadd.f32 0.0, %v1232
        %1234 = vmatmul.bf16.gmra.mxu0 %v1138
        %v1235 = vpop.f32.mrf.mxu0
        %v1236 = vadd.f32 0.0, %v1235
        %v1237 = vpop.f32.mrf.mxu0
        %v1238 = vadd.f32 0.0, %v1237
        %1239 = vmatmul.bf16.gmra.mxu0 %v1139
        %v1240 = vpop.f32.mrf.mxu0
        %v1241 = vadd.f32 0.0, %v1240
        %v1242 = vpop.f32.mrf.mxu0
        %v1243 = vadd.f32 0.0, %v1242
        %1244 = vdwg.mxu0
        %v1245 = vadd.f32 %v1051, %v1206
        %v1246 = vadd.f32 %v1052, %v1208
        %v1247 = vadd.f32 %v1053, %v1211
        %v1248 = vadd.f32 %v1054, %v1213
        %v1249 = vadd.f32 %v1055, %v1216
        %v1250 = vadd.f32 %v1056, %v1218
        %v1251 = vadd.f32 %v1057, %v1221
        %v1252 = vadd.f32 %v1058, %v1223
        %v1253 = vadd.f32 %v1059, %v1226
        %v1254 = vadd.f32 %v1060, %v1228
        %v1255 = vadd.f32 %v1061, %v1231
        %v1256 = vadd.f32 %v1062, %v1233
        %v1257 = vadd.f32 %v1063, %v1236
        %v1258 = vadd.f32 %v1064, %v1238
        %v1259 = vadd.f32 %v1065, %v1241
        %v1260 = vadd.f32 %v1066, %v1243
        %v1261 = vld [vmem:[%s292 + $0x20] sm:$0xff]
        %v1262 = vld [vmem:[%s292 + $0x28] sm:$0xff]
        %v1263 = vld [vmem:[%s292 + $0x30] sm:$0xff]
        %v1264 = vld [vmem:[%s292 + $0x38] sm:$0xff]
        %v1265 = vld [vmem:[%s292 + $0x40] sm:$0xff]
        %v1266 = vld [vmem:[%s292 + $0x48] sm:$0xff]
        %v1267 = vld [vmem:[%s292 + $0x50] sm:$0xff]
        %v1268 = vld [vmem:[%s292 + $0x58] sm:$0xff]
        %v1269 = vld [vmem:[%s292 + $0x60] sm:$0xff]
        %v1270 = vld [vmem:[%s292 + $0x68] sm:$0xff]
        %v1271 = vld [vmem:[%s292 + $0x70] sm:$0xff]
        %v1272 = vld [vmem:[%s292 + $0x78] sm:$0xff]
        %v1273 = vld [vmem:[%s304] sm:$0xff]
        %v1274 = vld [vmem:[%s304 + $0x8] sm:$0xff]
        %v1275 = vld [vmem:[%s304 + $0x10] sm:$0xff]
        %v1276 = vld [vmem:[%s304 + $0x18] sm:$0xff]
        %v1277 = vld [vmem:[%s3] sm:$0x1]
        %v1279 = vperm.slane %v1277, 0
        %v1281 = vadd.f32 %v1245, %v1279
        %v1282 = vadd.f32 %v1246, %v1279
        %v1283 = vadd.f32 %v1247, %v1279
        %v1284 = vadd.f32 %v1248, %v1279
        %v1285 = vadd.f32 %v1249, %v1279
        %v1286 = vadd.f32 %v1250, %v1279
        %v1287 = vadd.f32 %v1251, %v1279
        %v1288 = vadd.f32 %v1252, %v1279
        %v1289 = vadd.f32 %v1253, %v1279
        %v1290 = vadd.f32 %v1254, %v1279
        %v1291 = vadd.f32 %v1255, %v1279
        %v1292 = vadd.f32 %v1256, %v1279
        %v1293 = vadd.f32 %v1257, %v1279
        %v1294 = vadd.f32 %v1258, %v1279
        %v1295 = vadd.f32 %v1259, %v1279
        %v1296 = vadd.f32 %v1260, %v1279
        %v1297 = vmax.f32 %v1281, 0.0
        %v1298 = vmax.f32 %v1282, 0.0
        %v1299 = vmax.f32 %v1283, 0.0
        %v1300 = vmax.f32 %v1284, 0.0
        %v1301 = vmax.f32 %v1285, 0.0
        %v1302 = vmax.f32 %v1286, 0.0
        %v1303 = vmax.f32 %v1287, 0.0
        %v1304 = vmax.f32 %v1288, 0.0
        %v1305 = vmax.f32 %v1289, 0.0
        %v1306 = vmax.f32 %v1290, 0.0
        %v1307 = vmax.f32 %v1291, 0.0
        %v1308 = vmax.f32 %v1292, 0.0
        %v1309 = vmax.f32 %v1293, 0.0
        %v1310 = vmax.f32 %v1294, 0.0
        %v1311 = vmax.f32 %v1295, 0.0
        %v1312 = vmax.f32 %v1296, 0.0
        %v1313 = vadd.f32 %v1297, %v1261
        %v1314 = vadd.f32 %v1298, %v1262
        %v1315 = vadd.f32 %v1299, %v1263
        %v1316 = vadd.f32 %v1300, %v1264
        %v1317 = vadd.f32 %v1301, %v1265
        %v1318 = vadd.f32 %v1302, %v1266
        %v1319 = vadd.f32 %v1303, %v1267
        %v1320 = vadd.f32 %v1304, %v1268
        %v1321 = vadd.f32 %v1305, %v1269
        %v1322 = vadd.f32 %v1306, %v1270
        %v1323 = vadd.f32 %v1307, %v1271
        %v1324 = vadd.f32 %v1308, %v1272
        %v1325 = vadd.f32 %v1309, %v1273
        %v1326 = vadd.f32 %v1310, %v1274
        %v1327 = vadd.f32 %v1311, %v1275
        %v1328 = vadd.f32 %v1312, %v1276
        %1329 = vadd.xlane.f32.xlu0 %v1313
        %v1330 = vpop.xlane.xlu0 %1329
        %1331 = vadd.xlane.f32.xlu0 %v1314
        %v1332 = vpop.xlane.xlu0 %1331
        %1333 = vadd.xlane.f32.xlu0 %v1315
        %v1334 = vpop.xlane.xlu0 %1333
        %1335 = vadd.xlane.f32.xlu0 %v1316
        %v1336 = vpop.xlane.xlu0 %1335
        %1337 = vadd.xlane.f32.xlu0 %v1317
        %v1338 = vpop.xlane.xlu0 %1337
        %1339 = vadd.xlane.f32.xlu0 %v1318
        %v1340 = vpop.xlane.xlu0 %1339
        %1341 = vadd.xlane.f32.xlu0 %v1319
        %v1342 = vpop.xlane.xlu0 %1341
        %1343 = vadd.xlane.f32.xlu0 %v1320
        %v1344 = vpop.xlane.xlu0 %1343
        %1345 = vadd.xlane.f32.xlu0 %v1321
        %v1346 = vpop.xlane.xlu0 %1345
        %1347 = vadd.xlane.f32.xlu0 %v1322
        %v1348 = vpop.xlane.xlu0 %1347
        %1349 = vadd.xlane.f32.xlu0 %v1323
        %v1350 = vpop.xlane.xlu0 %1349
        %1351 = vadd.xlane.f32.xlu0 %v1324
        %v1352 = vpop.xlane.xlu0 %1351
        %1353 = vadd.xlane.f32.xlu0 %v1325
        %v1354 = vpop.xlane.xlu0 %1353
        %1355 = vadd.xlane.f32.xlu0 %v1326
        %v1356 = vpop.xlane.xlu0 %1355
        %1357 = vadd.xlane.f32.xlu0 %v1327
        %v1358 = vpop.xlane.xlu0 %1357
        %1359 = vadd.xlane.f32.xlu0 %v1328
        %v1360 = vpop.xlane.xlu0 %1359
        %v1361 = vrcp.pop 128.0
        %v1362 = vmul.f32 128.0, %v1361
        %v1363 = vsub.f32 1.0, %v1362
        %v1364 = vmul.f32 %v1361, %v1363
        %v1365 = vadd.f32 %v1361, %v1364
        %vm1366 = vweird.f32 %v1361
        %v1367 = vsel %vm1366, %v1361, %v1365
        %v1368 = vmul.f32 %v1330, %v1367
        %v1369 = vmul.f32 %v1332, %v1367
        %v1370 = vmul.f32 %v1334, %v1367
        %v1371 = vmul.f32 %v1336, %v1367
        %v1372 = vmul.f32 %v1338, %v1367
        %v1373 = vmul.f32 %v1340, %v1367
        %v1374 = vmul.f32 %v1342, %v1367
        %v1375 = vmul.f32 %v1344, %v1367
        %v1376 = vmul.f32 %v1346, %v1367
        %v1377 = vmul.f32 %v1348, %v1367
        %v1378 = vmul.f32 %v1350, %v1367
        %v1379 = vmul.f32 %v1352, %v1367
        %v1380 = vmul.f32 %v1354, %v1367
        %v1381 = vmul.f32 %v1356, %v1367
        %v1382 = vmul.f32 %v1358, %v1367
        %v1383 = vmul.f32 %v1360, %v1367
        %v1384 = vsub.f32 %v1313, %v1368
        %v1385 = vsub.f32 %v1314, %v1369
        %v1386 = vsub.f32 %v1315, %v1370
        %v1387 = vsub.f32 %v1316, %v1371
        %v1388 = vsub.f32 %v1317, %v1372
        %v1389 = vsub.f32 %v1318, %v1373
        %v1390 = vsub.f32 %v1319, %v1374
        %v1391 = vsub.f32 %v1320, %v1375
        %v1392 = vsub.f32 %v1321, %v1376
        %v1393 = vsub.f32 %v1322, %v1377
        %v1394 = vsub.f32 %v1323, %v1378
        %v1395 = vsub.f32 %v1324, %v1379
        %v1396 = vsub.f32 %v1325, %v1380
        %v1397 = vsub.f32 %v1326, %v1381
        %v1398 = vsub.f32 %v1327, %v1382
        %v1399 = vsub.f32 %v1328, %v1383
        %v1400 = vmul.f32 %v1384, %v1384
        %v1401 = vmul.f32 %v1385, %v1385
        %v1402 = vmul.f32 %v1386, %v1386
        %v1403 = vmul.f32 %v1387, %v1387
        %v1404 = vmul.f32 %v1388, %v1388
        %v1405 = vmul.f32 %v1389, %v1389
        %v1406 = vmul.f32 %v1390, %v1390
        %v1407 = vmul.f32 %v1391, %v1391
        %v1408 = vmul.f32 %v1392, %v1392
        %v1409 = vmul.f32 %v1393, %v1393
        %v1410 = vmul.f32 %v1394, %v1394
        %v1411 = vmul.f32 %v1395, %v1395
        %v1412 = vmul.f32 %v1396, %v1396
        %v1413 = vmul.f32 %v1397, %v1397
        %v1414 = vmul.f32 %v1398, %v1398
        %v1415 = vmul.f32 %v1399, %v1399
        %1416 = vadd.xlane.f32.xlu0 %v1400
        %v1417 = vpop.xlane.xlu0 %1416
        %1418 = vadd.xlane.f32.xlu0 %v1401
        %v1419 = vpop.xlane.xlu0 %1418
        %1420 = vadd.xlane.f32.xlu0 %v1402
        %v1421 = vpop.xlane.xlu0 %1420
        %1422 = vadd.xlane.f32.xlu0 %v1403
        %v1423 = vpop.xlane.xlu0 %1422
        %1424 = vadd.xlane.f32.xlu0 %v1404
        %v1425 = vpop.xlane.xlu0 %1424
        %1426 = vadd.xlane.f32.xlu0 %v1405
        %v1427 = vpop.xlane.xlu0 %1426
        %1428 = vadd.xlane.f32.xlu0 %v1406
        %v1429 = vpop.xlane.xlu0 %1428
        %1430 = vadd.xlane.f32.xlu0 %v1407
        %v1431 = vpop.xlane.xlu0 %1430
        %1432 = vadd.xlane.f32.xlu0 %v1408
        %v1433 = vpop.xlane.xlu0 %1432
        %1434 = vadd.xlane.f32.xlu0 %v1409
        %v1435 = vpop.xlane.xlu0 %1434
        %1436 = vadd.xlane.f32.xlu0 %v1410
        %v1437 = vpop.xlane.xlu0 %1436
        %1438 = vadd.xlane.f32.xlu0 %v1411
        %v1439 = vpop.xlane.xlu0 %1438
        %1440 = vadd.xlane.f32.xlu0 %v1412
        %v1441 = vpop.xlane.xlu0 %1440
        %1442 = vadd.xlane.f32.xlu0 %v1413
        %v1443 = vpop.xlane.xlu0 %1442
        %1444 = vadd.xlane.f32.xlu0 %v1414
        %v1445 = vpop.xlane.xlu0 %1444
        %1446 = vadd.xlane.f32.xlu0 %v1415
        %v1447 = vpop.xlane.xlu0 %1446
        %v1448 = vmul.f32 %v1417, %v1367
        %v1449 = vmul.f32 %v1419, %v1367
        %v1450 = vmul.f32 %v1421, %v1367
        %v1451 = vmul.f32 %v1423, %v1367
        %v1452 = vmul.f32 %v1425, %v1367
        %v1453 = vmul.f32 %v1427, %v1367
        %v1454 = vmul.f32 %v1429, %v1367
        %v1455 = vmul.f32 %v1431, %v1367
        %v1456 = vmul.f32 %v1433, %v1367
        %v1457 = vmul.f32 %v1435, %v1367
        %v1458 = vmul.f32 %v1437, %v1367
        %v1459 = vmul.f32 %v1439, %v1367
        %v1460 = vmul.f32 %v1441, %v1367
        %v1461 = vmul.f32 %v1443, %v1367
        %v1462 = vmul.f32 %v1445, %v1367
        %v1463 = vmul.f32 %v1447, %v1367
        %v1464 = vadd.f32 %v1448, 1e-05
        %v1465 = vadd.f32 %v1449, 1e-05
        %v1466 = vadd.f32 %v1450, 1e-05
        %v1467 = vadd.f32 %v1451, 1e-05
        %v1468 = vadd.f32 %v1452, 1e-05
        %v1469 = vadd.f32 %v1453, 1e-05
        %v1470 = vadd.f32 %v1454, 1e-05
        %v1471 = vadd.f32 %v1455, 1e-05
        %v1472 = vadd.f32 %v1456, 1e-05
        %v1473 = vadd.f32 %v1457, 1e-05
        %v1474 = vadd.f32 %v1458, 1e-05
        %v1475 = vadd.f32 %v1459, 1e-05
        %v1476 = vadd.f32 %v1460, 1e-05
        %v1477 = vadd.f32 %v1461, 1e-05
        %v1478 = vadd.f32 %v1462, 1e-05
        %v1479 = vadd.f32 %v1463, 1e-05
        %v1480 = vrsqrt.pop %v1464
        %v1481 = vmul.f32 %v1480, %v1464
        %v1482 = vmul.f32 %v1481, %v1480
        %v1483 = vmul.f32 0.5, %v1482
        %v1484 = vsub.f32 1.5, %v1483
        %v1485 = vmul.f32 %v1480, %v1484
        %vm1486 = vweird.f32 %v1464
        %vm1487 = vweird.f32 %v1480
        %vm1488 = vmor %vm1486, %vm1487
        %v1489 = vsel %vm1488, %v1480, %v1485
        %v1490 = vrsqrt.pop %v1465
        %v1491 = vmul.f32 %v1490, %v1465
        %v1492 = vmul.f32 %v1491, %v1490
        %v1493 = vmul.f32 0.5, %v1492
        %v1494 = vsub.f32 1.5, %v1493
        %v1495 = vmul.f32 %v1490, %v1494
        %vm1496 = vweird.f32 %v1465
        %vm1497 = vweird.f32 %v1490
        %vm1498 = vmor %vm1496, %vm1497
        %v1499 = vsel %vm1498, %v1490, %v1495
        %v1500 = vrsqrt.pop %v1466
        %v1501 = vmul.f32 %v1500, %v1466
        %v1502 = vmul.f32 %v1501, %v1500
        %v1503 = vmul.f32 0.5, %v1502
        %v1504 = vsub.f32 1.5, %v1503
        %v1505 = vmul.f32 %v1500, %v1504
        %vm1506 = vweird.f32 %v1466
        %vm1507 = vweird.f32 %v1500
        %vm1508 = vmor %vm1506, %vm1507
        %v1509 = vsel %vm1508, %v1500, %v1505
        %v1510 = vrsqrt.pop %v1467
        %v1511 = vmul.f32 %v1510, %v1467
        %v1512 = vmul.f32 %v1511, %v1510
        %v1513 = vmul.f32 0.5, %v1512
        %v1514 = vsub.f32 1.5, %v1513
        %v1515 = vmul.f32 %v1510, %v1514
        %vm1516 = vweird.f32 %v1467
        %vm1517 = vweird.f32 %v1510
        %vm1518 = vmor %vm1516, %vm1517
        %v1519 = vsel %vm1518, %v1510, %v1515
        %v1520 = vrsqrt.pop %v1468
        %v1521 = vmul.f32 %v1520, %v1468
        %v1522 = vmul.f32 %v1521, %v1520
        %v1523 = vmul.f32 0.5, %v1522
        %v1524 = vsub.f32 1.5, %v1523
        %v1525 = vmul.f32 %v1520, %v1524
        %vm1526 = vweird.f32 %v1468
        %vm1527 = vweird.f32 %v1520
        %vm1528 = vmor %vm1526, %vm1527
        %v1529 = vsel %vm1528, %v1520, %v1525
        %v1530 = vrsqrt.pop %v1469
        %v1531 = vmul.f32 %v1530, %v1469
        %v1532 = vmul.f32 %v1531, %v1530
        %v1533 = vmul.f32 0.5, %v1532
        %v1534 = vsub.f32 1.5, %v1533
        %v1535 = vmul.f32 %v1530, %v1534
        %vm1536 = vweird.f32 %v1469
        %vm1537 = vweird.f32 %v1530
        %vm1538 = vmor %vm1536, %vm1537
        %v1539 = vsel %vm1538, %v1530, %v1535
        %v1540 = vrsqrt.pop %v1470
        %v1541 = vmul.f32 %v1540, %v1470
        %v1542 = vmul.f32 %v1541, %v1540
        %v1543 = vmul.f32 0.5, %v1542
        %v1544 = vsub.f32 1.5, %v1543
        %v1545 = vmul.f32 %v1540, %v1544
        %vm1546 = vweird.f32 %v1470
        %vm1547 = vweird.f32 %v1540
        %vm1548 = vmor %vm1546, %vm1547
        %v1549 = vsel %vm1548, %v1540, %v1545
        %v1550 = vrsqrt.pop %v1471
        %v1551 = vmul.f32 %v1550, %v1471
        %v1552 = vmul.f32 %v1551, %v1550
        %v1553 = vmul.f32 0.5, %v1552
        %v1554 = vsub.f32 1.5, %v1553
        %v1555 = vmul.f32 %v1550, %v1554
        %vm1556 = vweird.f32 %v1471
        %vm1557 = vweird.f32 %v1550
        %vm1558 = vmor %vm1556, %vm1557
        %v1559 = vsel %vm1558, %v1550, %v1555
        %v1560 = vrsqrt.pop %v1472
        %v1561 = vmul.f32 %v1560, %v1472
        %v1562 = vmul.f32 %v1561, %v1560
        %v1563 = vmul.f32 0.5, %v1562
        %v1564 = vsub.f32 1.5, %v1563
        %v1565 = vmul.f32 %v1560, %v1564
        %vm1566 = vweird.f32 %v1472
        %vm1567 = vweird.f32 %v1560
        %vm1568 = vmor %vm1566, %vm1567
        %v1569 = vsel %vm1568, %v1560, %v1565
        %v1570 = vrsqrt.pop %v1473
        %v1571 = vmul.f32 %v1570, %v1473
        %v1572 = vmul.f32 %v1571, %v1570
        %v1573 = vmul.f32 0.5, %v1572
        %v1574 = vsub.f32 1.5, %v1573
        %v1575 = vmul.f32 %v1570, %v1574
        %vm1576 = vweird.f32 %v1473
        %vm1577 = vweird.f32 %v1570
        %vm1578 = vmor %vm1576, %vm1577
        %v1579 = vsel %vm1578, %v1570, %v1575
        %v1580 = vrsqrt.pop %v1474
        %v1581 = vmul.f32 %v1580, %v1474
        %v1582 = vmul.f32 %v1581, %v1580
        %v1583 = vmul.f32 0.5, %v1582
        %v1584 = vsub.f32 1.5, %v1583
        %v1585 = vmul.f32 %v1580, %v1584
        %vm1586 = vweird.f32 %v1474
        %vm1587 = vweird.f32 %v1580
        %vm1588 = vmor %vm1586, %vm1587
        %v1589 = vsel %vm1588, %v1580, %v1585
        %v1590 = vrsqrt.pop %v1475
        %v1591 = vmul.f32 %v1590, %v1475
        %v1592 = vmul.f32 %v1591, %v1590
        %v1593 = vmul.f32 0.5, %v1592
        %v1594 = vsub.f32 1.5, %v1593
        %v1595 = vmul.f32 %v1590, %v1594
        %vm1596 = vweird.f32 %v1475
        %vm1597 = vweird.f32 %v1590
        %vm1598 = vmor %vm1596, %vm1597
        %v1599 = vsel %vm1598, %v1590, %v1595
        %v1600 = vrsqrt.pop %v1476
        %v1601 = vmul.f32 %v1600, %v1476
        %v1602 = vmul.f32 %v1601, %v1600
        %v1603 = vmul.f32 0.5, %v1602
        %v1604 = vsub.f32 1.5, %v1603
        %v1605 = vmul.f32 %v1600, %v1604
        %vm1606 = vweird.f32 %v1476
        %vm1607 = vweird.f32 %v1600
        %vm1608 = vmor %vm1606, %vm1607
        %v1609 = vsel %vm1608, %v1600, %v1605
        %v1610 = vrsqrt.pop %v1477
        %v1611 = vmul.f32 %v1610, %v1477
        %v1612 = vmul.f32 %v1611, %v1610
        %v1613 = vmul.f32 0.5, %v1612
        %v1614 = vsub.f32 1.5, %v1613
        %v1615 = vmul.f32 %v1610, %v1614
        %vm1616 = vweird.f32 %v1477
        %vm1617 = vweird.f32 %v1610
        %vm1618 = vmor %vm1616, %vm1617
        %v1619 = vsel %vm1618, %v1610, %v1615
        %v1620 = vrsqrt.pop %v1478
        %v1621 = vmul.f32 %v1620, %v1478
        %v1622 = vmul.f32 %v1621, %v1620
        %v1623 = vmul.f32 0.5, %v1622
        %v1624 = vsub.f32 1.5, %v1623
        %v1625 = vmul.f32 %v1620, %v1624
        %vm1626 = vweird.f32 %v1478
        %vm1627 = vweird.f32 %v1620
        %vm1628 = vmor %vm1626, %vm1627
        %v1629 = vsel %vm1628, %v1620, %v1625
        %v1630 = vrsqrt.pop %v1479
        %v1631 = vmul.f32 %v1630, %v1479
        %v1632 = vmul.f32 %v1631, %v1630
        %v1633 = vmul.f32 0.5, %v1632
        %v1634 = vsub.f32 1.5, %v1633
        %v1635 = vmul.f32 %v1630, %v1634
        %vm1636 = vweird.f32 %v1479
        %vm1637 = vweird.f32 %v1630
        %vm1638 = vmor %vm1636, %vm1637
        %v1639 = vsel %vm1638, %v1630, %v1635
        %v1640 = vmul.f32 %v1384, %v1489
        %v1641 = vmul.f32 %v1385, %v1499
        %v1642 = vmul.f32 %v1386, %v1509
        %v1643 = vmul.f32 %v1387, %v1519
        %v1644 = vmul.f32 %v1388, %v1529
        %v1645 = vmul.f32 %v1389, %v1539
        %v1646 = vmul.f32 %v1390, %v1549
        %v1647 = vmul.f32 %v1391, %v1559
        %v1648 = vmul.f32 %v1392, %v1569
        %v1649 = vmul.f32 %v1393, %v1579
        %v1650 = vmul.f32 %v1394, %v1589
        %v1651 = vmul.f32 %v1395, %v1599
        %v1652 = vmul.f32 %v1396, %v1609
        %v1653 = vmul.f32 %v1397, %v1619
        %v1654 = vmul.f32 %v1398, %v1629
        %v1655 = vmul.f32 %v1399, %v1639
        %v1656 = vld [vmem:[%s4] sm:$0x1]
        %v1658 = vperm.slane %v1656, 0
        %v1660 = vmul.f32 %v1640, %v1658
        %v1661 = vmul.f32 %v1641, %v1658
        %v1662 = vmul.f32 %v1642, %v1658
        %v1663 = vmul.f32 %v1643, %v1658
        %v1664 = vmul.f32 %v1644, %v1658
        %v1665 = vmul.f32 %v1645, %v1658
        %v1666 = vmul.f32 %v1646, %v1658
        %v1667 = vmul.f32 %v1647, %v1658
        %v1668 = vmul.f32 %v1648, %v1658
        %v1669 = vmul.f32 %v1649, %v1658
        %v1670 = vmul.f32 %v1650, %v1658
        %v1671 = vmul.f32 %v1651, %v1658
        %v1672 = vmul.f32 %v1652, %v1658
        %v1673 = vmul.f32 %v1653, %v1658
        %v1674 = vmul.f32 %v1654, %v1658
        %v1675 = vmul.f32 %v1655, %v1658
        %v1676 = vld [vmem:[%s5] sm:$0x1]
        %v1678 = vperm.slane %v1676, 0
        %v1680 = vadd.f32 %v1660, %v1678
        %v1681 = vadd.f32 %v1661, %v1678
        %v1682 = vadd.f32 %v1662, %v1678
        %v1683 = vadd.f32 %v1663, %v1678
        %v1684 = vadd.f32 %v1664, %v1678
        %v1685 = vadd.f32 %v1665, %v1678
        %v1686 = vadd.f32 %v1666, %v1678
        %v1687 = vadd.f32 %v1667, %v1678
        %v1688 = vadd.f32 %v1668, %v1678
        %v1689 = vadd.f32 %v1669, %v1678
        %v1690 = vadd.f32 %v1670, %v1678
        %v1691 = vadd.f32 %v1671, %v1678
        %v1692 = vadd.f32 %v1672, %v1678
        %v1693 = vadd.f32 %v1673, %v1678
        %v1694 = vadd.f32 %v1674, %v1678
        %v1695 = vadd.f32 %v1675, %v1678
        %1696 = vst [vmem:[%s283] sm:$0xff] %v1680
        %1697 = vst [vmem:[%s283 + $0x8] sm:$0xff] %v1681
        %1698 = vst [vmem:[%s283 + $0x10] sm:$0xff] %v1682
        %1699 = vst [vmem:[%s283 + $0x18] sm:$0xff] %v1683
        %1700 = vst [vmem:[%s283 + $0x20] sm:$0xff] %v1684
        %1701 = vst [vmem:[%s283 + $0x28] sm:$0xff] %v1685
        %1702 = vst [vmem:[%s283 + $0x30] sm:$0xff] %v1686
        %1703 = vst [vmem:[%s283 + $0x38] sm:$0xff] %v1687
        %1704 = vst [vmem:[%s283 + $0x40] sm:$0xff] %v1688
        %1705 = vst [vmem:[%s283 + $0x48] sm:$0xff] %v1689
        %1706 = vst [vmem:[%s283 + $0x50] sm:$0xff] %v1690
        %1707 = vst [vmem:[%s283 + $0x58] sm:$0xff] %v1691
        %1708 = vst [vmem:[%s283 + $0x60] sm:$0xff] %v1692
        %1709 = vst [vmem:[%s283 + $0x68] sm:$0xff] %v1693
        %1710 = vst [vmem:[%s283 + $0x70] sm:$0xff] %v1694
        %1711 = vst [vmem:[%s283 + $0x78] sm:$0xff] %v1695
        %s1712 = sand.u32 %s168, 1
        %s1713 = scalar_lea.sflag [#allocation4], %s1712
        %s1714 = sand.u32 %s168, 1
        %s1715 = smul.addr %s1714, 128
        %s1716 = scalar_lea.vmem [#allocation3], %s1715
        // Predicated region
        $region45: #{tds_conv2d_block.1} parent=43 // pred_check
          %p1717 = pneg %p178
        $region46: #{tds_conv2d_block.1} parent=43 // pred_check_branch
          %1719 = sbr.rel (%p1717) target = $region48
        $region47: #{tds_conv2d_block.1} parent=43 // pred_region
          %s1720 = smul.u32 16, %s20
          %1722 = vsyncadd %s1713, 0
          %s1723 = smul.addr %s1720, 8
          %s1724 = scalar_lea.hbm %s6, %s1723
          %s1725 = sshll.u32 %s1716, 4
          %s1726 = int_to_ptr.vmem [resolvable:$true] %s1725
          %s1727 = sshll.u32 %s1724, 4
          %s1728 = int_to_ptr.hbm [resolvable:$true] %s1727
          %1733 = dma.vmem_to_hbm [thread:$0]  %s1726, 2048, %s1728, %s1713, 128, 128, 8
        $region48: #{tds_conv2d_block.1} parent=43 // pred_fallthru
          _
      $region44: #{tds_conv2d_block.1} parent=5 // pred_fallthru
        _
      %p1734 = scmp.le.s32.totalorder 2, %s15
      // Predicated region
      $region49: #{tds_conv2d_block.1} parent=5 // pred_check
        %p1735 = pneg %p1734
      $region50: #{tds_conv2d_block.1} parent=5 // pred_check_branch
        %1737 = sbr.rel (%p1735) target = $region52
      $region51: #{tds_conv2d_block.1} parent=5 // pred_region
        %s1738 = ssub.s32 %s15, 2
        // Predicated region
        $region53: #{tds_conv2d_block.1} parent=51 // pred_check
          %p1739 = pneg %p184
        $region54: #{tds_conv2d_block.1} parent=51 // pred_check_branch
          %1741 = sbr.rel (%p1739) target = $region56
        $region55: #{tds_conv2d_block.1} parent=51 // pred_region
          %s1742 = sand.u32 %s169, 1
          %s1743 = scalar_lea.sflag [#allocation4], %s1742
          %s1744 = sand.u32 %s169, 1
          %s1745 = smul.addr %s1744, 128
          %s1746 = scalar_lea.vmem [#allocation3], %s1745
          %1748 = dma.done %s1743, 2048
        $region56: #{tds_conv2d_block.1} parent=51 // pred_fallthru
          _
      $region52: #{tds_conv2d_block.1} parent=5 // pred_fallthru
        _
    $region6: #{tds_conv2d_block.1} parent=1 // loop_footer
      %s19 = sadd.s32 1, %s15
    $region7: #{tds_conv2d_block.1} parent=1 // loop_footer_branch
      %14 = sbr.rel target = $region3
    $region8: #{tds_conv2d_block.1} parent=1 // loop_exit
      _
    %1749 = vsyncpa [#allocation4], 1
    %s1750 = scalar_lea.sflag [#allocation4], 1
    %1751 = vsyncpa %s1750, 1

</llo_original>
